<compile_context>
chip_gen: v7x
topology: tpu7x:2x2x1
jax: 0.10.0
libtpu: 0.0.40
codegen_flags: <defaults>
</compile_context>

<pallas_src>
import random

import jax
import jax.numpy as jnp
from jax.experimental import pallas as pl
from jax.experimental.pallas import tpu as pltpu

C = 24          # channels after the group-sum reduction
H = 28
W = 28
P = H * W       # 784 flattened spatial positions (row-major: p = h*W + w)
K1 = 7          # taps of the width-conv (first unfold, kernel (7,1), pad 3)
K2 = 3          # taps of the height-conv (second unfold, kernel (3,1), pad 1)
KMID = 21       # intermediate channels (last dim of both weights)
OUT = 192       # output channels

NUM_BLOCKS = 2          # split output rows across 2 TensorCores on v7x
BLOCK_P = P // NUM_BLOCKS   # 392 output rows per grid step
HALO = W                # 1 H-row of halo (=W flat rows) on each side


def kernel(a_ref, w2_ref, w1_ref, y_ref, t5_ref):
    # a_ref : (P + 2*HALO, 7*C)  bf16   im2col slab of the W-conv, zero halos
    # w2_ref: (7*C, 3*KMID)      bf16   W-conv weight tiled 3x along output
    # w1_ref: (3*KMID, OUT)      bf16   H-conv weight, (tap, k) flattened rows
    # y_ref : (BLOCK_P, OUT)     f32    output rows of this grid step
    # t5_ref: (BLOCK_P + 2*HALO, 3*KMID) bf16 scratch (intermediate conv-W out)
    i = pl.program_id(0)
    row0 = pl.multiple_of(i * BLOCK_P, 8)

    # ---- 7-tap conv along W: one deep (K=168) MXU matmul --------------------
    a_blk = a_ref[pl.ds(row0, BLOCK_P + 2 * HALO), :]            # (448, 168)
    t5 = jnp.dot(a_blk, w2_ref[...],
                 preferred_element_type=jnp.float32)             # (448, 63) f32
    t5_ref[...] = t5.astype(jnp.bfloat16)

    # ---- 3-tap conv along H: build (BLOCK_P, 63) im2col slab ----------------
    # Window j (row offset j*W in the scratch) holds t5 shifted by (j-1) image
    # rows; its own 21-wide column block j already carries the right values
    # because the matmul RHS was tiled 3x.  Zero padding at the image top /
    # bottom comes from the zero halo rows of a_pad (zero rows of t5).
    col = jax.lax.broadcasted_iota(jnp.int32, (BLOCK_P, K2 * KMID), 1)
    w_top = t5_ref[pl.ds(0, BLOCK_P), :]            # h-1 tap (j=0)
    w_mid = t5_ref[pl.ds(W, BLOCK_P), :]            # h   tap (j=1)
    w_bot = t5_ref[pl.ds(2 * W, BLOCK_P), :]        # h+1 tap (j=2)
    b = jnp.where(col < KMID, w_top,
                  jnp.where(col < 2 * KMID, w_mid, w_bot))       # (392, 63)

    # ---- one deep (K=63) MXU matmul to the 192 output channels --------------
    y_ref[...] = jnp.dot(b, w1_ref[...], preferred_element_type=jnp.float32)


def forward(x, w1, w2, shift):
    """x: (1, 48, 28, 28) NCHW; w1: (192, 3, 21); w2: (24, 7, 21)."""
    # ---- XLA glue: roll + group-sum + W-direction im2col (layout only) ------
    xr = jnp.roll(x, shift, axis=3)                          # torch.roll along W
    s = xr.reshape(2, C, H, W).sum(axis=0)                   # (24, 28, 28)
    sp = jnp.pad(s, ((0, 0), (0, 0), (3, 3)))                # unfold zero pad
    win = jnp.stack([sp[:, :, j:j + W] for j in range(K1)], axis=0)  # (7,24,28,28)
    a = win.transpose(2, 3, 0, 1).reshape(P, K1 * C)         # (784,168), col=j*C+c
    a_pad = jnp.pad(a, ((HALO, HALO), (0, 0))).astype(jnp.bfloat16)  # (840,168)

    # W-conv weight: rows (j*C + c), tiled 3x along output -> (168, 63)
    w2m = jnp.transpose(w2, (1, 0, 2)).reshape(K1 * C, KMID)
    w2_trip = jnp.tile(w2m, (1, K2)).astype(jnp.bfloat16)
    # H-conv weight: rows (j*KMID + k) -> (63, 192)
    w1f = jnp.transpose(w1, (1, 2, 0)).reshape(K2 * KMID, OUT).astype(jnp.bfloat16)

    y_flat = pl.pallas_call(
        kernel,
        out_shape=jax.ShapeDtypeStruct((P, OUT), jnp.float32),
        grid=(NUM_BLOCKS,),
        in_specs=[
            pl.BlockSpec((P + 2 * HALO, K1 * C), lambda i: (0, 0)),
            pl.BlockSpec((K1 * C, K2 * KMID), lambda i: (0, 0)),
            pl.BlockSpec((K2 * KMID, OUT), lambda i: (0, 0)),
        ],
        out_specs=pl.BlockSpec((BLOCK_P, OUT), lambda i: (i, 0)),
        scratch_shapes=[
            pltpu.VMEM((BLOCK_P + 2 * HALO, K2 * KMID), jnp.bfloat16),
        ],
        compiler_params=pltpu.CompilerParams(
            dimension_semantics=("parallel",)),
    )(a_pad, w2_trip, w1f)

    # (P, O) -> (1, 192, 28, 28)
    return y_flat.reshape(H, W, OUT).transpose(2, 0, 1)[None]


def reference(x, w1, w2, shift):
    """Pure-JAX re-statement of the PyTorch forward (for validation)."""
    t3 = x.reshape(1, 2, C, H, W).sum(axis=1)            # (1, 24, 28, 28)
    t4 = jnp.roll(t3, shift, axis=3)                     # torch.roll along W
    t4p = jnp.pad(t4, ((0, 0), (0, 0), (0, 0), (3, 3)))
    # win[c, h, j, w] = rolled[c, h, w + j - 3] (zero padded)
    win = jnp.stack([t4p[0, :, :, j:j + W] for j in range(K1)], axis=2)
    t5 = jnp.einsum('injm,ijk->nmk', win, w2)            # (28, 28, 21)
    t5p = jnp.pad(t5, ((1, 1), (0, 0), (0, 0)))
    win2 = jnp.stack([t5p[j:j + H] for j in range(K2)], axis=0)  # (3, 28, 28, 21)
    y = jnp.einsum('jmnk,ijk->imn', win2, w1)            # (192, 28, 28)
    return y[None]


if __name__ == "__main__":
    # deterministic stand-in for the module's random shift_direction
    random.seed(0)
    shift = int((random.random() > 0.5) * 2 - 1)         # +1 or -1

    key = jax.random.PRNGKey(0)
    kx, k1, k2 = jax.random.split(key, 3)
    x = jax.random.normal(kx, (1, 2 * C, H, W), dtype=jnp.float32)   # NCHW
    w1 = jax.random.normal(k1, (OUT, K2, KMID), dtype=jnp.float32)   # weights[0]
    w2 = jax.random.normal(k2, (C, K1, KMID), dtype=jnp.float32)     # weights[1]

    y = forward(x, w1, w2, shift)
    y = jax.block_until_ready(y)

    ref = reference(x, w1, w2, shift)
    assert y.shape == (1, OUT, H, W), y.shape
    err = float(jnp.max(jnp.abs(y - ref)))
    scale = float(jnp.max(jnp.abs(ref))) + 1e-6
    assert err <= 5e-2 * scale, f"mismatch: max|err|={err}, scale={scale}"
    print("KERNEL_OK")
</pallas_src>

<mosaic_0001>
module attributes {stable_mosaic.version = 11 : i64} {
  func.func @kernel(%arg0: i32, %arg1: memref<840x168xbf16, #tpu.memory_space<vmem>>, %arg2: memref<168x63xbf16, #tpu.memory_space<vmem>>, %arg3: memref<63x192xbf16, #tpu.memory_space<vmem>>, %arg4: memref<392x192xf32, #tpu.memory_space<vmem>>, %arg5: memref<448x63xbf16, #tpu.memory_space<vmem>>) attributes {dimension_semantics = [#tpu.dimension_semantics<parallel>], iteration_bounds = array<i64: 2>, scalar_prefetch = 0 : i64, scratch_operands = 1 : i64, tpu.core_type = #tpu.core_type<tc>, window_params = [{pipeline_mode = #tpu.pipeline_mode<synchronous>, transform_indices = @transform_0, window_bounds = array<i64: 840, 168>}, {pipeline_mode = #tpu.pipeline_mode<synchronous>, transform_indices = @transform_1, window_bounds = array<i64: 168, 63>}, {pipeline_mode = #tpu.pipeline_mode<synchronous>, transform_indices = @transform_2, window_bounds = array<i64: 63, 192>}, {transform_indices = @transform_3, window_bounds = array<i64: 392, 192>}]} {
    %c392_i32 = arith.constant 392 : i32
    %0 = arith.muli %arg0, %c392_i32 : i32
    %1 = tpu.assume_multiple %0, 8 : i32
    %2 = arith.index_cast %1 : i32 to index
    %c0 = arith.constant 0 : index
    %3 = vector.load %arg1[%2, %c0] : memref<840x168xbf16, #tpu.memory_space<vmem>>, vector<448x168xbf16>
    %c0_0 = arith.constant 0 : index
    %c0_1 = arith.constant 0 : index
    %4 = vector.load %arg2[%c0_0, %c0_1] : memref<168x63xbf16, #tpu.memory_space<vmem>>, vector<168x63xbf16>
    %cst = arith.constant dense<0.000000e+00> : vector<448x63xf32>
    %5 = tpu.matmul %3, %4, %cst {dimension_numbers = #tpu.dot_dimension_numbers<[1], [0], [0], [1], [0, 0, 1, 1], [], []>} : vector<448x168xbf16>, vector<168x63xbf16>, vector<448x63xf32> -> vector<448x63xf32>
    %6 = arith.truncf %5 : vector<448x63xf32> to vector<448x63xbf16>
    %c0_2 = arith.constant 0 : index
    %c0_3 = arith.constant 0 : index
    %7 = vector.load %arg5[%c0_2, %c0_3] : memref<448x63xbf16, #tpu.memory_space<vmem>>, vector<448x63xbf16>
    tpu.vector_store %arg5[%c0_2, %c0_3], %6 {strides = array<i32>} : memref<448x63xbf16, #tpu.memory_space<vmem>>, vector<448x63xbf16>,
    %8 = tpu.iota {dimensions = array<i32: 1>} : vector<392x63xi32>
    %c0_4 = arith.constant 0 : index
    %c0_5 = arith.constant 0 : index
    %9 = vector.load %arg5[%c0_4, %c0_5] : memref<448x63xbf16, #tpu.memory_space<vmem>>, vector<392x63xbf16>
    %c28 = arith.constant 28 : index
    %c0_6 = arith.constant 0 : index
    %10 = vector.load %arg5[%c28, %c0_6] : memref<448x63xbf16, #tpu.memory_space<vmem>>, vector<392x63xbf16>
    %c56 = arith.constant 56 : index
    %c0_7 = arith.constant 0 : index
    %11 = vector.load %arg5[%c56, %c0_7] : memref<448x63xbf16, #tpu.memory_space<vmem>>, vector<392x63xbf16>
    %c21_i32 = arith.constant 21 : i32
    %12 = vector.broadcast %c21_i32 : i32 to vector<392x63xi32>
    %13 = arith.cmpi slt, %8, %12 : vector<392x63xi32>
    %c42_i32 = arith.constant 42 : i32
    %14 = vector.broadcast %c42_i32 : i32 to vector<392x63xi32>
    %15 = arith.cmpi slt, %8, %14 : vector<392x63xi32>
    %16 = arith.select %15, %10, %11 : vector<392x63xi1>, vector<392x63xbf16>
    %17 = arith.select %13, %9, %16 : vector<392x63xi1>, vector<392x63xbf16>
    %c0_8 = arith.constant 0 : index
    %c0_9 = arith.constant 0 : index
    %18 = vector.load %arg3[%c0_8, %c0_9] : memref<63x192xbf16, #tpu.memory_space<vmem>>, vector<63x192xbf16>
    %cst_10 = arith.constant dense<0.000000e+00> : vector<392x192xf32>
    %19 = tpu.matmul %17, %18, %cst_10 {dimension_numbers = #tpu.dot_dimension_numbers<[1], [0], [0], [1], [0, 0, 1, 1], [], []>} : vector<392x63xbf16>, vector<63x192xbf16>, vector<392x192xf32> -> vector<392x192xf32>
    %c0_11 = arith.constant 0 : index
    %c0_12 = arith.constant 0 : index
    %20 = vector.load %arg4[%c0_11, %c0_12] : memref<392x192xf32, #tpu.memory_space<vmem>>, vector<392x192xf32>
    tpu.vector_store %arg4[%c0_11, %c0_12], %19 {strides = array<i32>} : memref<392x192xf32, #tpu.memory_space<vmem>>, vector<392x192xf32>,
    return
  }
  func.func @transform_0(%arg0: i32) -> (i32, i32) {
    %c0_i32 = arith.constant 0 : i32
    %c0_i32_0 = arith.constant 0 : i32
    %c0_i32_1 = arith.constant 0 : i32
    return %c0_i32, %c0_i32_0 : i32, i32
  }
  func.func @transform_1(%arg0: i32) -> (i32, i32) {
    %c0_i32 = arith.constant 0 : i32
    %c0_i32_0 = arith.constant 0 : i32
    %c0_i32_1 = arith.constant 0 : i32
    return %c0_i32, %c0_i32_0 : i32, i32
  }
  func.func @transform_2(%arg0: i32) -> (i32, i32) {
    %c0_i32 = arith.constant 0 : i32
    %c0_i32_0 = arith.constant 0 : i32
    %c0_i32_1 = arith.constant 0 : i32
    return %c0_i32, %c0_i32_0 : i32, i32
  }
  func.func @transform_3(%arg0: i32) -> (i32, i32) {
    %c0_i32 = arith.constant 0 : i32
    %c0_i32_0 = arith.constant 0 : i32
    return %arg0, %c0_i32 : i32, i32
  }
}

</mosaic_0001>

<llo_original>
// kernel: tpu_custom_call.1
$region0: #{tpu_custom_call.1}
  #allocation0 [shape = 'u32[]', space=smem, size = 0x4, offset = 0x4, fixed_abs, tag = 'smem constant byte address 0x4 - core index']
  #allocation1 [shape = 'u32[144,128]{1,0:T(1,128)}', space=vmem, size = 0x12000, scoped, tag = 'internal scratch']
  #allocation2 [shape = 'bf16[448,63]{1,0:T(16,128)(2,1)}', space=vmem, size = 0x1c000, scoped, tag = 'scratch operand']
  %s0 = inlined_call_operand.vmem [shape: bf16[840,168], index: 0, kind: input, shape index: {}]
  %s1 = inlined_call_operand.vmem [shape: bf16[168,63], index: 1, kind: input, shape index: {}]
  %s2 = inlined_call_operand.vmem [shape: bf16[63,192], index: 2, kind: input, shape index: {}]
  %s3 = inlined_call_operand.vmem [shape: f32[784,192], index: 3, kind: output, shape index: {}]
  %s4 = sld [smem:[#allocation0]]
  $region45: #{tpu_custom_call.1} parent=0
    _
  %s6 = ssub.s32 1, %s4
  %s7 = scalar_select 0, %s6, %s4
  loop: start=0, step=1, limit=4
  $region2: #{tpu_custom_call.1} parent=0 // loop_pre_header
    _
  $region3: #{tpu_custom_call.1} parent=0 // loop_header
    %s9 = sphi 0, %s13
    %p10 = scmp.ge.s32.totalorder %s9, 4
    %s17 = sphi 0, %s17
    %s19 = sphi 0, %s17
    %s20 = sphi 0, %s19
    %s34 = sphi 0, %s20
    %s38 = sphi 0, %s38
    %s40 = sphi 0, %s38
    %s41 = sphi 0, %s40
    %s55 = sphi 0, %s41
    %s59 = sphi 0, %s59
    %s61 = sphi 0, %s59
    %s62 = sphi 0, %s61
    %s76 = sphi 0, %s62
    %s82 = sphi 0, %s84
    %s85 = sphi 0, %s82
    %s86 = sphi 0, %s85
    %s102 = sphi 0, %s86
  $region4: #{tpu_custom_call.1} parent=0 // loop_header_branch
    %12 = sbr.rel (%p10) target = $region8
  $region5: #{tpu_custom_call.1} parent=0 // loop_body
    %s14 = ssub.s32 %s9, 1
    %s15 = ssub.s32 %s9, 2
    %s16 = sadd.s32 %s9, 1
    %s18 = sadd.s32 %s17, 1
    %p21 = scmp.eq.s32.totalorder %s9, 1
    %p22 = scmp.ne.s32.totalorder %s17, %s19
    %p23 = scmp.eq.s32.totalorder %s9, 0
    %p24 = por %p22, %p23
    %p25 = scmp.ne.s32.totalorder %s17, %s19
    %p26 = scmp.eq.s32.totalorder %s14, 1
    %p27 = por %p25, %p26
    %p28 = scmp.ne.s32.totalorder %s19, %s20
    %p29 = scmp.eq.s32.totalorder %s14, 0
    %p30 = por %p28, %p29
    %p31 = scmp.ne.s32.totalorder %s19, %s20
    %p32 = scmp.eq.s32.totalorder %s15, 1
    %p33 = por %p31, %p32
    %p35 = scmp.ne.s32.totalorder %s20, %s34
    %p36 = scmp.eq.s32.totalorder %s15, 0
    %p37 = por %p35, %p36
    %s39 = sadd.s32 %s38, 1
    %p42 = scmp.eq.s32.totalorder %s9, 1
    %p43 = scmp.ne.s32.totalorder %s38, %s40
    %p44 = scmp.eq.s32.totalorder %s9, 0
    %p45 = por %p43, %p44
    %p46 = scmp.ne.s32.totalorder %s38, %s40
    %p47 = scmp.eq.s32.totalorder %s14, 1
    %p48 = por %p46, %p47
    %p49 = scmp.ne.s32.totalorder %s40, %s41
    %p50 = scmp.eq.s32.totalorder %s14, 0
    %p51 = por %p49, %p50
    %p52 = scmp.ne.s32.totalorder %s40, %s41
    %p53 = scmp.eq.s32.totalorder %s15, 1
    %p54 = por %p52, %p53
    %p56 = scmp.ne.s32.totalorder %s41, %s55
    %p57 = scmp.eq.s32.totalorder %s15, 0
    %p58 = por %p56, %p57
    %s60 = sadd.s32 %s59, 1
    %p63 = scmp.eq.s32.totalorder %s9, 1
    %p64 = scmp.ne.s32.totalorder %s59, %s61
    %p65 = scmp.eq.s32.totalorder %s9, 0
    %p66 = por %p64, %p65
    %p67 = scmp.ne.s32.totalorder %s59, %s61
    %p68 = scmp.eq.s32.totalorder %s14, 1
    %p69 = por %p67, %p68
    %p70 = scmp.ne.s32.totalorder %s61, %s62
    %p71 = scmp.eq.s32.totalorder %s14, 0
    %p72 = por %p70, %p71
    %p73 = scmp.ne.s32.totalorder %s61, %s62
    %p74 = scmp.eq.s32.totalorder %s15, 1
    %p75 = por %p73, %p74
    %p77 = scmp.ne.s32.totalorder %s62, %s76
    %p78 = scmp.eq.s32.totalorder %s15, 0
    %p79 = por %p77, %p78
    %s80 = ssub.s32 %s9, %s16
    %p81 = scmp.eq.s32.totalorder %s80, 0
    %s83 = sadd.s32 %s82, 1
    %s84 = scalar_select %p81, %s82, %s83
    %p87 = pneg %p81
    %p88 = scmp.eq.s32.totalorder %s9, 1
    %p89 = por %p87, %p88
    %p90 = scmp.ne.s32.totalorder %s82, %s85
    %p91 = scmp.eq.s32.totalorder %s9, 0
    %p92 = por %p90, %p91
    %p93 = scmp.ne.s32.totalorder %s82, %s85
    %p94 = scmp.eq.s32.totalorder %s14, 1
    %p95 = por %p93, %p94
    %p96 = scmp.ne.s32.totalorder %s85, %s86
    %p97 = scmp.eq.s32.totalorder %s14, 0
    %p98 = por %p96, %p97
    %p99 = scmp.ne.s32.totalorder %s85, %s86
    %p100 = scmp.eq.s32.totalorder %s15, 1
    %p101 = por %p99, %p100
    %p103 = scmp.ne.s32.totalorder %s86, %s102
    %p104 = scmp.eq.s32.totalorder %s15, 0
    %p105 = por %p103, %p104
    %p106 = scmp.le.s32.totalorder 1, %s9
    %p107 = scmp.lt.s32.totalorder %s9, 3
    %p108 = pnand %p106, %p107
    %p109 = pneg %p108
    // Predicated region
    $region9: #{tpu_custom_call.1} parent=5 // pred_check
      _
    $region10: #{tpu_custom_call.1} parent=5 // pred_check_branch
      %111 = sbr.rel (%p108) target = $region12
    $region11: #{tpu_custom_call.1} parent=5 // pred_region
      %s112 = ssub.s32 %s9, 1
      // Predicated region
      $region13: #{tpu_custom_call.1} parent=11 // pred_check
        %p113 = pneg %p30
      $region14: #{tpu_custom_call.1} parent=11 // pred_check_branch
        %115 = sbr.rel (%p113) target = $region16
      $region15: #{tpu_custom_call.1} parent=11 // pred_region
        _
      $region16: #{tpu_custom_call.1} parent=11 // pred_fallthru
        _
      // Predicated region
      $region17: #{tpu_custom_call.1} parent=11 // pred_check
        %p116 = pneg %p51
      $region18: #{tpu_custom_call.1} parent=11 // pred_check_branch
        %118 = sbr.rel (%p116) target = $region20
      $region19: #{tpu_custom_call.1} parent=11 // pred_region
        _
      $region20: #{tpu_custom_call.1} parent=11 // pred_fallthru
        _
      // Predicated region
      $region21: #{tpu_custom_call.1} parent=11 // pred_check
        %p119 = pneg %p72
      $region22: #{tpu_custom_call.1} parent=11 // pred_check_branch
        %121 = sbr.rel (%p119) target = $region24
      $region23: #{tpu_custom_call.1} parent=11 // pred_region
        _
      $region24: #{tpu_custom_call.1} parent=11 // pred_fallthru
        _
    $region12: #{tpu_custom_call.1} parent=5 // pred_fallthru
      _
    %p122 = scmp.lt.s32.totalorder %s9, 2
    // Predicated region
    $region25: #{tpu_custom_call.1} parent=5 // pred_check
      %p123 = pneg %p122
    $region26: #{tpu_custom_call.1} parent=5 // pred_check_branch
      %125 = sbr.rel (%p123) target = $region28
    $region27: #{tpu_custom_call.1} parent=5 // pred_region
      _
    $region28: #{tpu_custom_call.1} parent=5 // pred_fallthru
      _
    %p126 = scmp.le.s32.totalorder 1, %s9
    %p127 = scmp.lt.s32.totalorder %s9, 3
    %p128 = pnand %p126, %p127
    %p129 = pneg %p128
    // Predicated region
    $region29: #{tpu_custom_call.1} parent=5 // pred_check
      _
    $region30: #{tpu_custom_call.1} parent=5 // pred_check_branch
      %131 = sbr.rel (%p128) target = $region32
    $region31: #{tpu_custom_call.1} parent=5 // pred_region
      %s132 = ssub.s32 %s9, 1
      %p133 = pneg %p30
      %p134 = pneg %p27
      %p135 = pneg %p51
      %p136 = pneg %p48
      %p137 = pneg %p72
      %p138 = pneg %p69
      %p139 = pneg %p98
      %p140 = pneg %p95
      %s141 = smul.u32 49, %s14
      %p142 = scmp.lt.s32.totalorder %s141, 97
      %s143 = scalar_select %p142, %s141, 97
      %s144 = smul.addr %s143, 2
      %s145 = smul.addr %s144, 8
      %s146 = scalar_lea.vmem %s3, %s145
      %s147 = smul.u32 49, %s14
      %p148 = scmp.lt.s32.totalorder %s147, 97
      %s149 = scalar_select %p148, %s147, 97
      %s150 = smul.addr %s149, 2
      %s151 = smul.addr %s150, 8
      %s152 = scalar_lea.vmem %s3, %s151
      %s153 = smul.u32 49, %s14
      %s157 = smul.u32 %s14, 392
      %s158 = sshra.s32 %s157, 3
      %s159 = sand.u32 %s157, 7
      %s160 = smul.u32 %s158, 2
      %s161 = smul.addr %s160, 4
      %s162 = scalar_lea.vmem %s0, %s161
      %v163 = vld [vmem:[%s162] sm:$0xff]
      %v164 = vld [vmem:[%s162 + $0x8] sm:$0xff]
      %v165 = vld [vmem:[%s162 + $0x10] sm:$0xff]
      %v166 = vld [vmem:[%s162 + $0x18] sm:$0xff]
      %v167 = vld [vmem:[%s162 + $0x20] sm:$0xff]
      %v168 = vld [vmem:[%s162 + $0x28] sm:$0xff]
      %v169 = vld [vmem:[%s162 + $0x30] sm:$0xff]
      %v170 = vld [vmem:[%s162 + $0x38] sm:$0xff]
      %v171 = vld [vmem:[%s162 + $0x40] sm:$0xff]
      %v172 = vld [vmem:[%s162 + $0x48] sm:$0xff]
      %v173 = vld [vmem:[%s162 + $0x50] sm:$0xff]
      %v174 = vld [vmem:[%s162 + $0x58] sm:$0xff]
      %v175 = vld [vmem:[%s162 + $0x60] sm:$0xff]
      %v176 = vld [vmem:[%s162 + $0x68] sm:$0xff]
      %v177 = vld [vmem:[%s162 + $0x70] sm:$0xff]
      %v178 = vld [vmem:[%s162 + $0x78] sm:$0xff]
      %v179 = vld [vmem:[%s162 + $0x80] sm:$0xff]
      %v180 = vld [vmem:[%s162 + $0x88] sm:$0xff]
      %v181 = vld [vmem:[%s162 + $0x90] sm:$0xff]
      %v182 = vld [vmem:[%s162 + $0x98] sm:$0xff]
      %v183 = vld [vmem:[%s162 + $0xa0] sm:$0xff]
      %v184 = vld [vmem:[%s162 + $0xa8] sm:$0xff]
      %v185 = vld [vmem:[%s162 + $0xb0] sm:$0xff]
      %v186 = vld [vmem:[%s162 + $0xb8] sm:$0xff]
      %v187 = vld [vmem:[%s162 + $0xc0] sm:$0xff]
      %v188 = vld [vmem:[%s162 + $0xc8] sm:$0xff]
      %v189 = vld [vmem:[%s162 + $0xd0] sm:$0xff]
      %v190 = vld [vmem:[%s162 + $0xd8] sm:$0xff]
      %v191 = vld [vmem:[%s162 + $0xe0] sm:$0xff]
      %v192 = vld [vmem:[%s162 + $0xe8] sm:$0xff]
      %v193 = vld [vmem:[%s162 + $0xf0] sm:$0xff]
      %v194 = vld [vmem:[%s162 + $0xf8] sm:$0xff]
      %v195 = vld [vmem:[%s162 + $0x100] sm:$0xff]
      %v196 = vld [vmem:[%s162 + $0x108] sm:$0xff]
      %v197 = vld [vmem:[%s162 + $0x110] sm:$0xff]
      %v198 = vld [vmem:[%s162 + $0x118] sm:$0xff]
      %v199 = vld [vmem:[%s162 + $0x120] sm:$0xff]
      %v200 = vld [vmem:[%s162 + $0x128] sm:$0xff]
      %v201 = vld [vmem:[%s162 + $0x130] sm:$0xff]
      %v202 = vld [vmem:[%s162 + $0x138] sm:$0xff]
      %v203 = vld [vmem:[%s162 + $0x140] sm:$0xff]
      %v204 = vld [vmem:[%s162 + $0x148] sm:$0xff]
      %v205 = vld [vmem:[%s162 + $0x150] sm:$0xff]
      %v206 = vld [vmem:[%s162 + $0x158] sm:$0xff]
      %v207 = vld [vmem:[%s162 + $0x160] sm:$0xff]
      %v208 = vld [vmem:[%s162 + $0x168] sm:$0xff]
      %v209 = vld [vmem:[%s162 + $0x170] sm:$0xff]
      %v210 = vld [vmem:[%s162 + $0x178] sm:$0xff]
      %v211 = vld [vmem:[%s162 + $0x180] sm:$0xff]
      %v212 = vld [vmem:[%s162 + $0x188] sm:$0xff]
      %v213 = vld [vmem:[%s162 + $0x190] sm:$0xff]
      %v214 = vld [vmem:[%s162 + $0x198] sm:$0xff]
      %v215 = vld [vmem:[%s162 + $0x1a0] sm:$0xff]
      %v216 = vld [vmem:[%s162 + $0x1a8] sm:$0xff]
      %v217 = vld [vmem:[%s162 + $0x1b0] sm:$0xff]
      %v218 = vld [vmem:[%s162 + $0x1b8] sm:$0xff]
      %v219 = vld [vmem:[%s1] sm:$0xf]
      %v220 = vld [vmem:[%s1 + $0x4] sm:$0xf]
      %v221 = vld [vmem:[%s1 + $0x8] sm:$0xf]
      %v222 = vld [vmem:[%s1 + $0xc] sm:$0xf]
      %v223 = vld [vmem:[%s1 + $0x10] sm:$0xf]
      %v224 = vld [vmem:[%s1 + $0x14] sm:$0xf]
      %v225 = vld [vmem:[%s1 + $0x18] sm:$0xf]
      %v226 = vld [vmem:[%s1 + $0x1c] sm:$0xf]
      %v227 = vld [vmem:[%s1 + $0x20] sm:$0xf]
      %v228 = vld [vmem:[%s1 + $0x24] sm:$0xf]
      %v229 = vld [vmem:[%s1 + $0x28] sm:$0xf]
      %v230 = vld [vmem:[%s1 + $0x2c] sm:$0xf]
      %v231 = vld [vmem:[%s1 + $0x30] sm:$0xf]
      %v232 = vld [vmem:[%s1 + $0x34] sm:$0xf]
      %v233 = vld [vmem:[%s1 + $0x38] sm:$0xf]
      %v234 = vld [vmem:[%s1 + $0x3c] sm:$0xf]
      %v235 = vld [vmem:[%s1 + $0x40] sm:$0xf]
      %v236 = vld [vmem:[%s1 + $0x44] sm:$0xf]
      %v237 = vld [vmem:[%s1 + $0x48] sm:$0xf]
      %v238 = vld [vmem:[%s1 + $0x4c] sm:$0xf]
      %v239 = vld [vmem:[%s1 + $0x50] sm:$0xf]
      %v296 = vunpack.c.l.b16 %v163
      %v297 = vunpack.c.h.b16 %v163
      %v298 = vunpack.c.l.b16 %v164
      %v299 = vunpack.c.h.b16 %v164
      %v300 = vunpack.c.l.b16 %v165
      %v301 = vunpack.c.h.b16 %v165
      %v302 = vunpack.c.l.b16 %v166
      %v303 = vunpack.c.h.b16 %v166
      %v304 = vunpack.c.l.b16 %v167
      %v305 = vunpack.c.h.b16 %v167
      %v306 = vunpack.c.l.b16 %v168
      %v307 = vunpack.c.h.b16 %v168
      %v308 = vunpack.c.l.b16 %v169
      %v309 = vunpack.c.h.b16 %v169
      %v310 = vunpack.c.l.b16 %v170
      %v311 = vunpack.c.h.b16 %v170
      %v312 = vunpack.c.l.b16 %v171
      %v313 = vunpack.c.h.b16 %v171
      %v314 = vunpack.c.l.b16 %v172
      %v315 = vunpack.c.h.b16 %v172
      %v316 = vunpack.c.l.b16 %v173
      %v317 = vunpack.c.h.b16 %v173
      %v318 = vunpack.c.l.b16 %v174
      %v319 = vunpack.c.h.b16 %v174
      %v320 = vunpack.c.l.b16 %v175
      %v321 = vunpack.c.h.b16 %v175
      %v322 = vunpack.c.l.b16 %v176
      %v323 = vunpack.c.h.b16 %v176
      %v324 = vunpack.c.l.b16 %v177
      %v325 = vunpack.c.h.b16 %v177
      %v326 = vunpack.c.l.b16 %v178
      %v327 = vunpack.c.h.b16 %v178
      %v328 = vunpack.c.l.b16 %v179
      %v329 = vunpack.c.h.b16 %v179
      %v330 = vunpack.c.l.b16 %v180
      %v331 = vunpack.c.h.b16 %v180
      %v332 = vunpack.c.l.b16 %v181
      %v333 = vunpack.c.h.b16 %v181
      %v334 = vunpack.c.l.b16 %v182
      %v335 = vunpack.c.h.b16 %v182
      %v336 = vunpack.c.l.b16 %v183
      %v337 = vunpack.c.h.b16 %v183
      %v338 = vunpack.c.l.b16 %v184
      %v339 = vunpack.c.h.b16 %v184
      %v340 = vunpack.c.l.b16 %v185
      %v341 = vunpack.c.h.b16 %v185
      %v342 = vunpack.c.l.b16 %v186
      %v343 = vunpack.c.h.b16 %v186
      %v344 = vunpack.c.l.b16 %v187
      %v345 = vunpack.c.h.b16 %v187
      %v346 = vunpack.c.l.b16 %v188
      %v347 = vunpack.c.h.b16 %v188
      %v348 = vunpack.c.l.b16 %v189
      %v349 = vunpack.c.h.b16 %v189
      %v350 = vunpack.c.l.b16 %v190
      %v351 = vunpack.c.h.b16 %v190
      %v352 = vunpack.c.l.b16 %v191
      %v353 = vunpack.c.h.b16 %v191
      %v354 = vunpack.c.l.b16 %v192
      %v355 = vunpack.c.h.b16 %v192
      %v356 = vunpack.c.l.b16 %v193
      %v357 = vunpack.c.h.b16 %v193
      %v358 = vunpack.c.l.b16 %v194
      %v359 = vunpack.c.h.b16 %v194
      %v360 = vunpack.c.l.b16 %v195
      %v361 = vunpack.c.h.b16 %v195
      %v362 = vunpack.c.l.b16 %v196
      %v363 = vunpack.c.h.b16 %v196
      %v364 = vunpack.c.l.b16 %v197
      %v365 = vunpack.c.h.b16 %v197
      %v366 = vunpack.c.l.b16 %v198
      %v367 = vunpack.c.h.b16 %v198
      %v368 = vunpack.c.l.b16 %v199
      %v369 = vunpack.c.h.b16 %v199
      %v370 = vunpack.c.l.b16 %v200
      %v371 = vunpack.c.h.b16 %v200
      %v372 = vunpack.c.l.b16 %v201
      %v373 = vunpack.c.h.b16 %v201
      %v374 = vunpack.c.l.b16 %v202
      %v375 = vunpack.c.h.b16 %v202
      %v376 = vunpack.c.l.b16 %v203
      %v377 = vunpack.c.h.b16 %v203
      %v378 = vunpack.c.l.b16 %v204
      %v379 = vunpack.c.h.b16 %v204
      %v380 = vunpack.c.l.b16 %v205
      %v381 = vunpack.c.h.b16 %v205
      %v382 = vunpack.c.l.b16 %v206
      %v383 = vunpack.c.h.b16 %v206
      %v384 = vunpack.c.l.b16 %v207
      %v385 = vunpack.c.h.b16 %v207
      %v386 = vunpack.c.l.b16 %v208
      %v387 = vunpack.c.h.b16 %v208
      %v388 = vunpack.c.l.b16 %v209
      %v389 = vunpack.c.h.b16 %v209
      %v390 = vunpack.c.l.b16 %v210
      %v391 = vunpack.c.h.b16 %v210
      %v392 = vunpack.c.l.b16 %v211
      %v393 = vunpack.c.h.b16 %v211
      %v394 = vunpack.c.l.b16 %v212
      %v395 = vunpack.c.h.b16 %v212
      %v396 = vunpack.c.l.b16 %v213
      %v397 = vunpack.c.h.b16 %v213
      %v398 = vunpack.c.l.b16 %v214
      %v399 = vunpack.c.h.b16 %v214
      %v400 = vunpack.c.l.b16 %v215
      %v401 = vunpack.c.h.b16 %v215
      %v402 = vunpack.c.l.b16 %v216
      %v403 = vunpack.c.h.b16 %v216
      %v404 = vunpack.c.l.b16 %v217
      %v405 = vunpack.c.h.b16 %v217
      %v406 = vunpack.c.l.b16 %v218
      %v407 = vunpack.c.h.b16 %v218
      %v408 = vpack.c.b16 %v298, %v296
      %v409 = vpack.c.b16 %v299, %v297
      %v410 = vpack.c.b16 %v302, %v300
      %v411 = vpack.c.b16 %v303, %v301
      %v412 = vpack.c.b16 %v306, %v304
      %v413 = vpack.c.b16 %v307, %v305
      %v414 = vpack.c.b16 %v310, %v308
      %v415 = vpack.c.b16 %v311, %v309
      %v416 = vpack.c.b16 %v314, %v312
      %v417 = vpack.c.b16 %v315, %v313
      %v418 = vpack.c.b16 %v318, %v316
      %v419 = vpack.c.b16 %v319, %v317
      %v420 = vpack.c.b16 %v322, %v320
      %v421 = vpack.c.b16 %v323, %v321
      %v422 = vpack.c.b16 %v326, %v324
      %v423 = vpack.c.b16 %v327, %v325
      %v424 = vpack.c.b16 %v330, %v328
      %v425 = vpack.c.b16 %v331, %v329
      %v426 = vpack.c.b16 %v334, %v332
      %v427 = vpack.c.b16 %v335, %v333
      %v428 = vpack.c.b16 %v338, %v336
      %v429 = vpack.c.b16 %v339, %v337
      %v430 = vpack.c.b16 %v342, %v340
      %v431 = vpack.c.b16 %v343, %v341
      %v432 = vpack.c.b16 %v346, %v344
      %v433 = vpack.c.b16 %v347, %v345
      %v434 = vpack.c.b16 %v350, %v348
      %v435 = vpack.c.b16 %v351, %v349
      %v436 = vpack.c.b16 %v354, %v352
      %v437 = vpack.c.b16 %v355, %v353
      %v438 = vpack.c.b16 %v358, %v356
      %v439 = vpack.c.b16 %v359, %v357
      %v440 = vpack.c.b16 %v362, %v360
      %v441 = vpack.c.b16 %v363, %v361
      %v442 = vpack.c.b16 %v366, %v364
      %v443 = vpack.c.b16 %v367, %v365
      %v444 = vpack.c.b16 %v370, %v368
      %v445 = vpack.c.b16 %v371, %v369
      %v446 = vpack.c.b16 %v374, %v372
      %v447 = vpack.c.b16 %v375, %v373
      %v448 = vpack.c.b16 %v378, %v376
      %v449 = vpack.c.b16 %v379, %v377
      %v450 = vpack.c.b16 %v382, %v380
      %v451 = vpack.c.b16 %v383, %v381
      %v452 = vpack.c.b16 %v386, %v384
      %v453 = vpack.c.b16 %v387, %v385
      %v454 = vpack.c.b16 %v390, %v388
      %v455 = vpack.c.b16 %v391, %v389
      %v456 = vpack.c.b16 %v394, %v392
      %v457 = vpack.c.b16 %v395, %v393
      %v458 = vpack.c.b16 %v398, %v396
      %v459 = vpack.c.b16 %v399, %v397
      %v460 = vpack.c.b16 %v402, %v400
      %v461 = vpack.c.b16 %v403, %v401
      %v462 = vpack.c.b16 %v406, %v404
      %v463 = vpack.c.b16 %v407, %v405
      %v513 = vunpack.c.l.b16 %v219
      %v514 = vunpack.c.l.b16 %v220
      %v515 = vunpack.c.l.b16 %v221
      %v516 = vunpack.c.l.b16 %v222
      %v517 = vunpack.c.l.b16 %v223
      %v518 = vunpack.c.l.b16 %v224
      %v519 = vunpack.c.l.b16 %v225
      %v520 = vunpack.c.l.b16 %v226
      %v521 = vunpack.c.l.b16 %v227
      %v522 = vunpack.c.l.b16 %v228
      %v523 = vunpack.c.l.b16 %v229
      %v524 = vunpack.c.l.b16 %v230
      %v525 = vunpack.c.l.b16 %v231
      %v526 = vunpack.c.l.b16 %v232
      %v527 = vunpack.c.l.b16 %v233
      %v528 = vunpack.c.l.b16 %v234
      %v529 = vunpack.c.l.b16 %v235
      %v530 = vunpack.c.l.b16 %v236
      %v531 = vunpack.c.l.b16 %v237
      %v532 = vunpack.c.l.b16 %v238
      %v533 = vunpack.c.l.b16 %v239
      %v534 = vpack.c.b16 %v514, %v513
      %v535 = vpack.c.b16 %v516, %v515
      %v536 = vpack.c.b16 %v518, %v517
      %v537 = vpack.c.b16 %v520, %v519
      %v538 = vpack.c.b16 %v522, %v521
      %v539 = vpack.c.b16 %v524, %v523
      %v540 = vpack.c.b16 %v526, %v525
      %v541 = vpack.c.b16 %v528, %v527
      %v542 = vpack.c.b16 %v530, %v529
      %v543 = vpack.c.b16 %v532, %v531
      %v544 = vpack.c.b16 %v533, %v533
      %vm555 = vcmask 326656
      %v557 = vsel %vm555, %v409, 0
      %v560 = vsel %vm555, %v411, 0
      %v563 = vsel %vm555, %v413, 0
      %v566 = vsel %vm555, %v415, 0
      %v569 = vsel %vm555, %v417, 0
      %v572 = vsel %vm555, %v419, 0
      %v575 = vsel %vm555, %v421, 0
      %v578 = vsel %vm555, %v423, 0
      %v581 = vsel %vm555, %v425, 0
      %v584 = vsel %vm555, %v427, 0
      %v587 = vsel %vm555, %v429, 0
      %v590 = vsel %vm555, %v431, 0
      %v593 = vsel %vm555, %v433, 0
      %v596 = vsel %vm555, %v435, 0
      %v599 = vsel %vm555, %v437, 0
      %v602 = vsel %vm555, %v439, 0
      %v605 = vsel %vm555, %v441, 0
      %v608 = vsel %vm555, %v443, 0
      %v611 = vsel %vm555, %v445, 0
      %v614 = vsel %vm555, %v447, 0
      %v617 = vsel %vm555, %v449, 0
      %v620 = vsel %vm555, %v451, 0
      %v623 = vsel %vm555, %v453, 0
      %v626 = vsel %vm555, %v455, 0
      %v629 = vsel %vm555, %v457, 0
      %v632 = vsel %vm555, %v459, 0
      %v635 = vsel %vm555, %v461, 0
      %v638 = vsel %vm555, %v463, 0
      %vm640 = vcmask 1043456
      %v642 = vsel %vm640, %v544, 0
      %644 = vmatprep.subr.bf16.mxu0 0
      %645 = vmatpush1.bf16.msra.mxu0 %v534
      %646 = vmatprep.subr.bf16.mxu0 0
      %647 = vmatpush1.bf16.msra.mxu0 %v535
      %648 = vmatprep.subr.bf16.mxu0 0
      %649 = vmatpush1.bf16.msra.mxu0 %v536
      %650 = vmatprep.subr.bf16.mxu0 0
      %651 = vmatpush1.bf16.msra.mxu0 %v537
      %652 = vmatprep.subr.bf16.mxu0 0
      %653 = vmatpush1.bf16.msra.mxu0 %v538
      %654 = vmatprep.subr.bf16.mxu0 0
      %655 = vmatpush1.bf16.msra.mxu0 %v539
      %656 = vmatprep.subr.bf16.mxu0 0
      %657 = vmatpush1.bf16.msra.mxu0 %v540
      %658 = vmatprep.subr.bf16.mxu0 0
      %659 = vmatpush1.bf16.msra.mxu0 %v541
      %660 = vmatprep.subr.bf16.mxu0 0
      %661 = vmatpush1.bf16.msra.mxu0 %v542
      %662 = vmatprep.subr.bf16.mxu0 0
      %663 = vmatpush1.bf16.msra.mxu0 %v543
      %664 = vmatprep.subr.bf16.mxu0 0
      %665 = vmatpush1.bf16.msra.mxu0 %v642
      %666 = vmatprep.subr.bf16.mxu0 0
      %667 = vmatpush1.bf16.msra.mxu0 0
      %668 = vmatprep.subr.bf16.mxu0 0
      %669 = vmatpush1.bf16.msra.mxu0 0
      %670 = vmatprep.subr.bf16.mxu0 0
      %671 = vmatpush1.bf16.msra.mxu0 0
      %672 = vmatprep.subr.bf16.mxu0 0
      %673 = vmatpush1.bf16.msra.mxu0 0
      %674 = vmatprep.subr.bf16.mxu0 0
      %675 = vmatpush1.bf16.msra.mxu0 0
      %676 = vmatprep.mubr.bf16.mxu0 %v557
      %677 = vmatmul.mubr.bf16.gmra.mrb[0].mxu0 %v408
      %v678 = vpop.f32.mrb[0].mxu0
      %v679 = vadd.f32 0.0, %v678
      %v680 = vpop.f32.mrb[0].mxu0
      %v681 = vpop.f32.mrb[0].mxu0
      %v682 = vadd.f32 0.0, %v681
      %v683 = vpop.f32.mrb[0].mxu0
      %684 = vmatprep.mubr.bf16.mxu0 %v560
      %685 = vmatmul.mubr.bf16.gmra.mrb[0].mxu0 %v410
      %v686 = vpop.f32.mrb[0].mxu0
      %v687 = vadd.f32 0.0, %v686
      %v688 = vpop.f32.mrb[0].mxu0
      %v689 = vpop.f32.mrb[0].mxu0
      %v690 = vadd.f32 0.0, %v689
      %v691 = vpop.f32.mrb[0].mxu0
      %692 = vmatprep.mubr.bf16.mxu0 %v563
      %693 = vmatmul.mubr.bf16.gmra.mrb[0].mxu0 %v412
      %v694 = vpop.f32.mrb[0].mxu0
      %v695 = vadd.f32 0.0, %v694
      %v696 = vpop.f32.mrb[0].mxu0
      %v697 = vpop.f32.mrb[0].mxu0
      %v698 = vadd.f32 0.0, %v697
      %v699 = vpop.f32.mrb[0].mxu0
      %700 = vmatprep.mubr.bf16.mxu0 %v566
      %701 = vmatmul.mubr.bf16.gmra.mrb[0].mxu0 %v414
      %v702 = vpop.f32.mrb[0].mxu0
      %v703 = vadd.f32 0.0, %v702
      %v704 = vpop.f32.mrb[0].mxu0
      %v705 = vpop.f32.mrb[0].mxu0
      %v706 = vadd.f32 0.0, %v705
      %v707 = vpop.f32.mrb[0].mxu0
      %708 = vmatprep.mubr.bf16.mxu0 %v569
      %709 = vmatmul.mubr.bf16.gmra.mrb[0].mxu0 %v416
      %v710 = vpop.f32.mrb[0].mxu0
      %v711 = vadd.f32 0.0, %v710
      %v712 = vpop.f32.mrb[0].mxu0
      %v713 = vpop.f32.mrb[0].mxu0
      %v714 = vadd.f32 0.0, %v713
      %v715 = vpop.f32.mrb[0].mxu0
      %716 = vmatprep.mubr.bf16.mxu0 %v572
      %717 = vmatmul.mubr.bf16.gmra.mrb[0].mxu0 %v418
      %v718 = vpop.f32.mrb[0].mxu0
      %v719 = vadd.f32 0.0, %v718
      %v720 = vpop.f32.mrb[0].mxu0
      %v721 = vpop.f32.mrb[0].mxu0
      %v722 = vadd.f32 0.0, %v721
      %v723 = vpop.f32.mrb[0].mxu0
      %724 = vmatprep.mubr.bf16.mxu0 %v575
      %725 = vmatmul.mubr.bf16.gmra.mrb[0].mxu0 %v420
      %v726 = vpop.f32.mrb[0].mxu0
      %v727 = vadd.f32 0.0, %v726
      %v728 = vpop.f32.mrb[0].mxu0
      %v729 = vpop.f32.mrb[0].mxu0
      %v730 = vadd.f32 0.0, %v729
      %v731 = vpop.f32.mrb[0].mxu0
      %732 = vmatprep.mubr.bf16.mxu0 %v578
      %733 = vmatmul.mubr.bf16.gmra.mrb[0].mxu0 %v422
      %v734 = vpop.f32.mrb[0].mxu0
      %v735 = vadd.f32 0.0, %v734
      %v736 = vpop.f32.mrb[0].mxu0
      %v737 = vpop.f32.mrb[0].mxu0
      %v738 = vadd.f32 0.0, %v737
      %v739 = vpop.f32.mrb[0].mxu0
      %740 = vmatprep.mubr.bf16.mxu0 %v581
      %741 = vmatmul.mubr.bf16.gmra.mrb[0].mxu0 %v424
      %v742 = vpop.f32.mrb[0].mxu0
      %v743 = vadd.f32 0.0, %v742
      %v744 = vpop.f32.mrb[0].mxu0
      %v745 = vpop.f32.mrb[0].mxu0
      %v746 = vadd.f32 0.0, %v745
      %v747 = vpop.f32.mrb[0].mxu0
      %748 = vmatprep.mubr.bf16.mxu0 %v584
      %749 = vmatmul.mubr.bf16.gmra.mrb[0].mxu0 %v426
      %v750 = vpop.f32.mrb[0].mxu0
      %v751 = vadd.f32 0.0, %v750
      %v752 = vpop.f32.mrb[0].mxu0
      %v753 = vpop.f32.mrb[0].mxu0
      %v754 = vadd.f32 0.0, %v753
      %v755 = vpop.f32.mrb[0].mxu0
      %756 = vmatprep.mubr.bf16.mxu0 %v587
      %757 = vmatmul.mubr.bf16.gmra.mrb[0].mxu0 %v428
      %v758 = vpop.f32.mrb[0].mxu0
      %v759 = vadd.f32 0.0, %v758
      %v760 = vpop.f32.mrb[0].mxu0
      %v761 = vpop.f32.mrb[0].mxu0
      %v762 = vadd.f32 0.0, %v761
      %v763 = vpop.f32.mrb[0].mxu0
      %764 = vmatprep.mubr.bf16.mxu0 %v590
      %765 = vmatmul.mubr.bf16.gmra.mrb[0].mxu0 %v430
      %v766 = vpop.f32.mrb[0].mxu0
      %v767 = vadd.f32 0.0, %v766
      %v768 = vpop.f32.mrb[0].mxu0
      %v769 = vpop.f32.mrb[0].mxu0
      %v770 = vadd.f32 0.0, %v769
      %v771 = vpop.f32.mrb[0].mxu0
      %772 = vmatprep.mubr.bf16.mxu0 %v593
      %773 = vmatmul.mubr.bf16.gmra.mrb[0].mxu0 %v432
      %v774 = vpop.f32.mrb[0].mxu0
      %v775 = vadd.f32 0.0, %v774
      %v776 = vpop.f32.mrb[0].mxu0
      %v777 = vpop.f32.mrb[0].mxu0
      %v778 = vadd.f32 0.0, %v777
      %v779 = vpop.f32.mrb[0].mxu0
      %780 = vmatprep.mubr.bf16.mxu0 %v596
      %781 = vmatmul.mubr.bf16.gmra.mrb[0].mxu0 %v434
      %v782 = vpop.f32.mrb[0].mxu0
      %v783 = vadd.f32 0.0, %v782
      %v784 = vpop.f32.mrb[0].mxu0
      %v785 = vpop.f32.mrb[0].mxu0
      %v786 = vadd.f32 0.0, %v785
      %v787 = vpop.f32.mrb[0].mxu0
      %788 = vmatprep.mubr.bf16.mxu0 %v599
      %789 = vmatmul.mubr.bf16.gmra.mrb[0].mxu0 %v436
      %v790 = vpop.f32.mrb[0].mxu0
      %v791 = vadd.f32 0.0, %v790
      %v792 = vpop.f32.mrb[0].mxu0
      %v793 = vpop.f32.mrb[0].mxu0
      %v794 = vadd.f32 0.0, %v793
      %v795 = vpop.f32.mrb[0].mxu0
      %796 = vmatprep.mubr.bf16.mxu0 %v602
      %797 = vmatmul.mubr.bf16.gmra.mrb[0].mxu0 %v438
      %v798 = vpop.f32.mrb[0].mxu0
      %v799 = vadd.f32 0.0, %v798
      %v800 = vpop.f32.mrb[0].mxu0
      %v801 = vpop.f32.mrb[0].mxu0
      %v802 = vadd.f32 0.0, %v801
      %v803 = vpop.f32.mrb[0].mxu0
      %804 = vmatprep.mubr.bf16.mxu0 %v605
      %805 = vmatmul.mubr.bf16.gmra.mrb[0].mxu0 %v440
      %v806 = vpop.f32.mrb[0].mxu0
      %v807 = vadd.f32 0.0, %v806
      %v808 = vpop.f32.mrb[0].mxu0
      %v809 = vpop.f32.mrb[0].mxu0
      %v810 = vadd.f32 0.0, %v809
      %v811 = vpop.f32.mrb[0].mxu0
      %812 = vmatprep.mubr.bf16.mxu0 %v608
      %813 = vmatmul.mubr.bf16.gmra.mrb[0].mxu0 %v442
      %v814 = vpop.f32.mrb[0].mxu0
      %v815 = vadd.f32 0.0, %v814
      %v816 = vpop.f32.mrb[0].mxu0
      %v817 = vpop.f32.mrb[0].mxu0
      %v818 = vadd.f32 0.0, %v817
      %v819 = vpop.f32.mrb[0].mxu0
      %820 = vmatprep.mubr.bf16.mxu0 %v611
      %821 = vmatmul.mubr.bf16.gmra.mrb[0].mxu0 %v444
      %v822 = vpop.f32.mrb[0].mxu0
      %v823 = vadd.f32 0.0, %v822
      %v824 = vpop.f32.mrb[0].mxu0
      %v825 = vpop.f32.mrb[0].mxu0
      %v826 = vadd.f32 0.0, %v825
      %v827 = vpop.f32.mrb[0].mxu0
      %828 = vmatprep.mubr.bf16.mxu0 %v614
      %829 = vmatmul.mubr.bf16.gmra.mrb[0].mxu0 %v446
      %v830 = vpop.f32.mrb[0].mxu0
      %v831 = vadd.f32 0.0, %v830
      %v832 = vpop.f32.mrb[0].mxu0
      %v833 = vpop.f32.mrb[0].mxu0
      %v834 = vadd.f32 0.0, %v833
      %v835 = vpop.f32.mrb[0].mxu0
      %836 = vmatprep.mubr.bf16.mxu0 %v617
      %837 = vmatmul.mubr.bf16.gmra.mrb[0].mxu0 %v448
      %v838 = vpop.f32.mrb[0].mxu0
      %v839 = vadd.f32 0.0, %v838
      %v840 = vpop.f32.mrb[0].mxu0
      %v841 = vpop.f32.mrb[0].mxu0
      %v842 = vadd.f32 0.0, %v841
      %v843 = vpop.f32.mrb[0].mxu0
      %844 = vmatprep.mubr.bf16.mxu0 %v620
      %845 = vmatmul.mubr.bf16.gmra.mrb[0].mxu0 %v450
      %v846 = vpop.f32.mrb[0].mxu0
      %v847 = vadd.f32 0.0, %v846
      %v848 = vpop.f32.mrb[0].mxu0
      %v849 = vpop.f32.mrb[0].mxu0
      %v850 = vadd.f32 0.0, %v849
      %v851 = vpop.f32.mrb[0].mxu0
      %852 = vmatprep.mubr.bf16.mxu0 %v623
      %853 = vmatmul.mubr.bf16.gmra.mrb[0].mxu0 %v452
      %v854 = vpop.f32.mrb[0].mxu0
      %v855 = vadd.f32 0.0, %v854
      %v856 = vpop.f32.mrb[0].mxu0
      %v857 = vpop.f32.mrb[0].mxu0
      %v858 = vadd.f32 0.0, %v857
      %v859 = vpop.f32.mrb[0].mxu0
      %860 = vmatprep.mubr.bf16.mxu0 %v626
      %861 = vmatmul.mubr.bf16.gmra.mrb[0].mxu0 %v454
      %v862 = vpop.f32.mrb[0].mxu0
      %v863 = vadd.f32 0.0, %v862
      %v864 = vpop.f32.mrb[0].mxu0
      %v865 = vpop.f32.mrb[0].mxu0
      %v866 = vadd.f32 0.0, %v865
      %v867 = vpop.f32.mrb[0].mxu0
      %868 = vmatprep.mubr.bf16.mxu0 %v629
      %869 = vmatmul.mubr.bf16.gmra.mrb[0].mxu0 %v456
      %v870 = vpop.f32.mrb[0].mxu0
      %v871 = vadd.f32 0.0, %v870
      %v872 = vpop.f32.mrb[0].mxu0
      %v873 = vpop.f32.mrb[0].mxu0
      %v874 = vadd.f32 0.0, %v873
      %v875 = vpop.f32.mrb[0].mxu0
      %876 = vmatprep.mubr.bf16.mxu0 %v632
      %877 = vmatmul.mubr.bf16.gmra.mrb[0].mxu0 %v458
      %v878 = vpop.f32.mrb[0].mxu0
      %v879 = vadd.f32 0.0, %v878
      %v880 = vpop.f32.mrb[0].mxu0
      %v881 = vpop.f32.mrb[0].mxu0
      %v882 = vadd.f32 0.0, %v881
      %v883 = vpop.f32.mrb[0].mxu0
      %884 = vmatprep.mubr.bf16.mxu0 %v635
      %885 = vmatmul.mubr.bf16.gmra.mrb[0].mxu0 %v460
      %v886 = vpop.f32.mrb[0].mxu0
      %v887 = vadd.f32 0.0, %v886
      %v888 = vpop.f32.mrb[0].mxu0
      %v889 = vpop.f32.mrb[0].mxu0
      %v890 = vadd.f32 0.0, %v889
      %v891 = vpop.f32.mrb[0].mxu0
      %892 = vmatprep.mubr.bf16.mxu0 %v638
      %893 = vmatmul.mubr.bf16.gmra.mrb[0].mxu0 %v462
      %v894 = vpop.f32.mrb[0].mxu0
      %v895 = vadd.f32 0.0, %v894
      %v896 = vpop.f32.mrb[0].mxu0
      %v897 = vpop.f32.mrb[0].mxu0
      %v898 = vadd.f32 0.0, %v897
      %v899 = vpop.f32.mrb[0].mxu0
      %900 = vdwg.mxu0
      %v901 = vpack.c.bf16 %v682, %v679
      %v902 = vpack.c.bf16 %v690, %v687
      %v903 = vpack.c.bf16 %v698, %v695
      %v904 = vpack.c.bf16 %v706, %v703
      %v905 = vpack.c.bf16 %v714, %v711
      %v906 = vpack.c.bf16 %v722, %v719
      %v907 = vpack.c.bf16 %v730, %v727
      %v908 = vpack.c.bf16 %v738, %v735
      %v909 = vpack.c.bf16 %v746, %v743
      %v910 = vpack.c.bf16 %v754, %v751
      %v911 = vpack.c.bf16 %v762, %v759
      %v912 = vpack.c.bf16 %v770, %v767
      %v913 = vpack.c.bf16 %v778, %v775
      %v914 = vpack.c.bf16 %v786, %v783
      %v915 = vpack.c.bf16 %v794, %v791
      %v916 = vpack.c.bf16 %v802, %v799
      %v917 = vpack.c.bf16 %v810, %v807
      %v918 = vpack.c.bf16 %v818, %v815
      %v919 = vpack.c.bf16 %v826, %v823
      %v920 = vpack.c.bf16 %v834, %v831
      %v921 = vpack.c.bf16 %v842, %v839
      %v922 = vpack.c.bf16 %v850, %v847
      %v923 = vpack.c.bf16 %v858, %v855
      %v924 = vpack.c.bf16 %v866, %v863
      %v925 = vpack.c.bf16 %v874, %v871
      %v926 = vpack.c.bf16 %v882, %v879
      %v927 = vpack.c.bf16 %v890, %v887
      %v928 = vpack.c.bf16 %v898, %v895
      %vm929 = vcmask 515072
      %930 = vst.msk [vmem:[#allocation2] sm:$0xff] %vm929, %v901
      %931 = vst.msk [vmem:[#allocation2 + $0x8] sm:$0xff] %vm929, %v902
      %932 = vst.msk [vmem:[#allocation2 + $0x10] sm:$0xff] %vm929, %v903
      %933 = vst.msk [vmem:[#allocation2 + $0x18] sm:$0xff] %vm929, %v904
      %934 = vst.msk [vmem:[#allocation2 + $0x20] sm:$0xff] %vm929, %v905
      %935 = vst.msk [vmem:[#allocation2 + $0x28] sm:$0xff] %vm929, %v906
      %936 = vst.msk [vmem:[#allocation2 + $0x30] sm:$0xff] %vm929, %v907
      %937 = vst.msk [vmem:[#allocation2 + $0x38] sm:$0xff] %vm929, %v908
      %938 = vst.msk [vmem:[#allocation2 + $0x40] sm:$0xff] %vm929, %v909
      %939 = vst.msk [vmem:[#allocation2 + $0x48] sm:$0xff] %vm929, %v910
      %940 = vst.msk [vmem:[#allocation2 + $0x50] sm:$0xff] %vm929, %v911
      %941 = vst.msk [vmem:[#allocation2 + $0x58] sm:$0xff] %vm929, %v912
      %942 = vst.msk [vmem:[#allocation2 + $0x60] sm:$0xff] %vm929, %v913
      %943 = vst.msk [vmem:[#allocation2 + $0x68] sm:$0xff] %vm929, %v914
      %944 = vst.msk [vmem:[#allocation2 + $0x70] sm:$0xff] %vm929, %v915
      %945 = vst.msk [vmem:[#allocation2 + $0x78] sm:$0xff] %vm929, %v916
      %946 = vst.msk [vmem:[#allocation2 + $0x80] sm:$0xff] %vm929, %v917
      %947 = vst.msk [vmem:[#allocation2 + $0x88] sm:$0xff] %vm929, %v918
      %948 = vst.msk [vmem:[#allocation2 + $0x90] sm:$0xff] %vm929, %v919
      %949 = vst.msk [vmem:[#allocation2 + $0x98] sm:$0xff] %vm929, %v920
      %950 = vst.msk [vmem:[#allocation2 + $0xa0] sm:$0xff] %vm929, %v921
      %951 = vst.msk [vmem:[#allocation2 + $0xa8] sm:$0xff] %vm929, %v922
      %952 = vst.msk [vmem:[#allocation2 + $0xb0] sm:$0xff] %vm929, %v923
      %953 = vst.msk [vmem:[#allocation2 + $0xb8] sm:$0xff] %vm929, %v924
      %954 = vst.msk [vmem:[#allocation2 + $0xc0] sm:$0xff] %vm929, %v925
      %955 = vst.msk [vmem:[#allocation2 + $0xc8] sm:$0xff] %vm929, %v926
      %956 = vst.msk [vmem:[#allocation2 + $0xd0] sm:$0xff] %vm929, %v927
      %957 = vst.msk [vmem:[#allocation2 + $0xd8] sm:$0xff] %vm929, %v928
      %v958 = vlaneseq
      %v959 = vand.u32 %v958, 127
      %v960 = vld [vmem:[#allocation2] sm:$0xff]
      %v961 = vld [vmem:[#allocation2 + $0x8] sm:$0xff]
      %v962 = vld [vmem:[#allocation2 + $0x10] sm:$0xff]
      %v963 = vld [vmem:[#allocation2 + $0x18] sm:$0xff]
      %v964 = vld [vmem:[#allocation2 + $0x20] sm:$0xff]
      %v965 = vld [vmem:[#allocation2 + $0x28] sm:$0xff]
      %v966 = vld [vmem:[#allocation2 + $0x30] sm:$0xff]
      %v967 = vld [vmem:[#allocation2 + $0x38] sm:$0xff]
      %v968 = vld [vmem:[#allocation2 + $0x40] sm:$0xff]
      %v969 = vld [vmem:[#allocation2 + $0x48] sm:$0xff]
      %v970 = vld [vmem:[#allocation2 + $0x50] sm:$0xff]
      %v971 = vld [vmem:[#allocation2 + $0x58] sm:$0xff]
      %v972 = vld [vmem:[#allocation2 + $0x60] sm:$0xff]
      %v973 = vld [vmem:[#allocation2 + $0x68] sm:$0xff]
      %v974 = vld [vmem:[#allocation2 + $0x70] sm:$0xff]
      %v975 = vld [vmem:[#allocation2 + $0x78] sm:$0xff]
      %v976 = vld [vmem:[#allocation2 + $0x80] sm:$0xff]
      %v977 = vld [vmem:[#allocation2 + $0x88] sm:$0xff]
      %v978 = vld [vmem:[#allocation2 + $0x90] sm:$0xff]
      %v979 = vld [vmem:[#allocation2 + $0x98] sm:$0xff]
      %v980 = vld [vmem:[#allocation2 + $0xa0] sm:$0xff]
      %v981 = vld [vmem:[#allocation2 + $0xa8] sm:$0xff]
      %v982 = vld [vmem:[#allocation2 + $0xb0] sm:$0xff]
      %v983 = vld [vmem:[#allocation2 + $0xb8] sm:$0xff]
      %v984 = vld [vmem:[#allocation2 + $0xc0] sm:$0xf]
      %v985 = vld [vmem:[#allocation2 + $0x8] sm:$0xc0]
      %v986 = vld [vmem:[#allocation2 + $0xc0] sm:$0xff]
      %v987 = vld [vmem:[#allocation2 + $0xc8] sm:$0xff]
      %v988 = vld [vmem:[#allocation2 + $0xd0] sm:$0x3]
      %v989 = vld [vmem:[#allocation2 + $0x18] sm:$0xf0]
      %v990 = vld [vmem:[#allocation2 + $0xd0] sm:$0xff]
      %v991 = vld [vmem:[#allocation2 + $0xd8] sm:$0xff]
      %vm992 = vcmp.lt.s32.totalorder %v959, 21
      %vm993 = vcmp.lt.s32.totalorder %v959, 42
      %vm994 = vmpackc.low %vm993, %vm993
      %v995 = vsel %vm994, 65537, 0
      %v996 = vlaneseq
      %v997 = vshrl.u32 %v996, 7
      %v998 = vsub.s32 0, %v997
      %v999 = vrot.slane %v995, %v998
      %vm1000 = vcmp.ne.s16.totalorder %v999, 0
      %vm1026 = vcmask 1041408
      %v1027 = vrot.slane %v989, 6
      %v1028 = vrot.slane %v964, 6
      %v1029 = vsel %vm1026, %v1027, %v1028
      %v1030 = vrot.slane %v965, 6
      %v1031 = vsel %vm1026, %v1028, %v1030
      %v1032 = vrot.slane %v966, 6
      %v1033 = vsel %vm1026, %v1030, %v1032
      %v1034 = vrot.slane %v967, 6
      %v1035 = vsel %vm1026, %v1032, %v1034
      %v1036 = vrot.slane %v968, 6
      %v1037 = vsel %vm1026, %v1034, %v1036
      %v1038 = vrot.slane %v969, 6
      %v1039 = vsel %vm1026, %v1036, %v1038
      %v1040 = vrot.slane %v970, 6
      %v1041 = vsel %vm1026, %v1038, %v1040
      %v1042 = vrot.slane %v971, 6
      %v1043 = vsel %vm1026, %v1040, %v1042
      %v1044 = vrot.slane %v972, 6
      %v1045 = vsel %vm1026, %v1042, %v1044
      %v1046 = vrot.slane %v973, 6
      %v1047 = vsel %vm1026, %v1044, %v1046
      %v1048 = vrot.slane %v974, 6
      %v1049 = vsel %vm1026, %v1046, %v1048
      %v1050 = vrot.slane %v975, 6
      %v1051 = vsel %vm1026, %v1048, %v1050
      %v1052 = vrot.slane %v976, 6
      %v1053 = vsel %vm1026, %v1050, %v1052
      %v1054 = vrot.slane %v977, 6
      %v1055 = vsel %vm1026, %v1052, %v1054
      %v1056 = vrot.slane %v978, 6
      %v1057 = vsel %vm1026, %v1054, %v1056
      %v1058 = vrot.slane %v979, 6
      %v1059 = vsel %vm1026, %v1056, %v1058
      %v1060 = vrot.slane %v980, 6
      %v1061 = vsel %vm1026, %v1058, %v1060
      %v1062 = vrot.slane %v981, 6
      %v1063 = vsel %vm1026, %v1060, %v1062
      %v1064 = vrot.slane %v982, 6
      %v1065 = vsel %vm1026, %v1062, %v1064
      %v1066 = vrot.slane %v983, 6
      %v1067 = vsel %vm1026, %v1064, %v1066
      %v1068 = vrot.slane %v986, 6
      %v1069 = vsel %vm1026, %v1066, %v1068
      %v1070 = vrot.slane %v987, 6
      %v1071 = vsel %vm1026, %v1068, %v1070
      %v1072 = vrot.slane %v990, 6
      %v1073 = vsel %vm1026, %v1070, %v1072
      %v1074 = vrot.slane %v991, 6
      %v1075 = vsel %vm1026, %v1072, %v1074
      %v1102 = vsel %vm1000, %v985, %v1027
      %v1103 = vsel %vm1000, %v962, %v1029
      %v1104 = vsel %vm1000, %v963, %v1031
      %v1105 = vsel %vm1000, %v964, %v1033
      %v1106 = vsel %vm1000, %v965, %v1035
      %v1107 = vsel %vm1000, %v966, %v1037
      %v1108 = vsel %vm1000, %v967, %v1039
      %v1109 = vsel %vm1000, %v968, %v1041
      %v1110 = vsel %vm1000, %v969, %v1043
      %v1111 = vsel %vm1000, %v970, %v1045
      %v1112 = vsel %vm1000, %v971, %v1047
      %v1113 = vsel %vm1000, %v972, %v1049
      %v1114 = vsel %vm1000, %v973, %v1051
      %v1115 = vsel %vm1000, %v974, %v1053
      %v1116 = vsel %vm1000, %v975, %v1055
      %v1117 = vsel %vm1000, %v976, %v1057
      %v1118 = vsel %vm1000, %v977, %v1059
      %v1119 = vsel %vm1000, %v978, %v1061
      %v1120 = vsel %vm1000, %v979, %v1063
      %v1121 = vsel %vm1000, %v980, %v1065
      %v1122 = vsel %vm1000, %v981, %v1067
      %v1123 = vsel %vm1000, %v982, %v1069
      %v1124 = vsel %vm1000, %v983, %v1071
      %v1125 = vsel %vm1000, %v986, %v1073
      %v1126 = vsel %vm1000, %v987, %v1075
      %v1127 = vsel %vm1000, %v988, %v1074
      %vm1128 = vmpackc.low %vm992, %vm992
      %v1129 = vsel %vm1128, 65537, 0
      %v1130 = vlaneseq
      %v1131 = vshrl.u32 %v1130, 7
      %v1132 = vsub.s32 0, %v1131
      %v1133 = vrot.slane %v1129, %v1132
      %vm1134 = vcmp.ne.s16.totalorder %v1133, 0
      %v1161 = vrot.slane %v1102, 6
      %v1162 = vrot.slane %v1103, 6
      %v1163 = vsel %vm1026, %v1161, %v1162
      %v1164 = vrot.slane %v1104, 6
      %v1165 = vsel %vm1026, %v1162, %v1164
      %v1166 = vrot.slane %v1105, 6
      %v1167 = vsel %vm1026, %v1164, %v1166
      %v1168 = vrot.slane %v1106, 6
      %v1169 = vsel %vm1026, %v1166, %v1168
      %v1170 = vrot.slane %v1107, 6
      %v1171 = vsel %vm1026, %v1168, %v1170
      %v1172 = vrot.slane %v1108, 6
      %v1173 = vsel %vm1026, %v1170, %v1172
      %v1174 = vrot.slane %v1109, 6
      %v1175 = vsel %vm1026, %v1172, %v1174
      %v1176 = vrot.slane %v1110, 6
      %v1177 = vsel %vm1026, %v1174, %v1176
      %v1178 = vrot.slane %v1111, 6
      %v1179 = vsel %vm1026, %v1176, %v1178
      %v1180 = vrot.slane %v1112, 6
      %v1181 = vsel %vm1026, %v1178, %v1180
      %v1182 = vrot.slane %v1113, 6
      %v1183 = vsel %vm1026, %v1180, %v1182
      %v1184 = vrot.slane %v1114, 6
      %v1185 = vsel %vm1026, %v1182, %v1184
      %v1186 = vrot.slane %v1115, 6
      %v1187 = vsel %vm1026, %v1184, %v1186
      %v1188 = vrot.slane %v1116, 6
      %v1189 = vsel %vm1026, %v1186, %v1188
      %v1190 = vrot.slane %v1117, 6
      %v1191 = vsel %vm1026, %v1188, %v1190
      %v1192 = vrot.slane %v1118, 6
      %v1193 = vsel %vm1026, %v1190, %v1192
      %v1194 = vrot.slane %v1119, 6
      %v1195 = vsel %vm1026, %v1192, %v1194
      %v1196 = vrot.slane %v1120, 6
      %v1197 = vsel %vm1026, %v1194, %v1196
      %v1198 = vrot.slane %v1121, 6
      %v1199 = vsel %vm1026, %v1196, %v1198
      %v1200 = vrot.slane %v1122, 6
      %v1201 = vsel %vm1026, %v1198, %v1200
      %v1202 = vrot.slane %v1123, 6
      %v1203 = vsel %vm1026, %v1200, %v1202
      %v1204 = vrot.slane %v1124, 6
      %v1205 = vsel %vm1026, %v1202, %v1204
      %v1206 = vrot.slane %v1125, 6
      %v1207 = vsel %vm1026, %v1204, %v1206
      %v1208 = vrot.slane %v1126, 6
      %v1209 = vsel %vm1026, %v1206, %v1208
      %v1210 = vrot.slane %v1127, 6
      %v1211 = vsel %vm1026, %v1208, %v1210
      %v1237 = vsel %vm1134, %v960, %v1163
      %v1238 = vsel %vm1134, %v961, %v1165
      %v1239 = vsel %vm1134, %v962, %v1167
      %v1240 = vsel %vm1134, %v963, %v1169
      %v1241 = vsel %vm1134, %v964, %v1171
      %v1242 = vsel %vm1134, %v965, %v1173
      %v1243 = vsel %vm1134, %v966, %v1175
      %v1244 = vsel %vm1134, %v967, %v1177
      %v1245 = vsel %vm1134, %v968, %v1179
      %v1246 = vsel %vm1134, %v969, %v1181
      %v1247 = vsel %vm1134, %v970, %v1183
      %v1248 = vsel %vm1134, %v971, %v1185
      %v1249 = vsel %vm1134, %v972, %v1187
      %v1250 = vsel %vm1134, %v973, %v1189
      %v1251 = vsel %vm1134, %v974, %v1191
      %v1252 = vsel %vm1134, %v975, %v1193
      %v1253 = vsel %vm1134, %v976, %v1195
      %v1254 = vsel %vm1134, %v977, %v1197
      %v1255 = vsel %vm1134, %v978, %v1199
      %v1256 = vsel %vm1134, %v979, %v1201
      %v1257 = vsel %vm1134, %v980, %v1203
      %v1258 = vsel %vm1134, %v981, %v1205
      %v1259 = vsel %vm1134, %v982, %v1207
      %v1260 = vsel %vm1134, %v983, %v1209
      %v1261 = vsel %vm1134, %v984, %v1211
      %v1262 = vld [vmem:[%s2] sm:$0xff]
      %v1263 = vld [vmem:[%s2 + $0x8] sm:$0xff]
      %v1264 = vld [vmem:[%s2 + $0x10] sm:$0xff]
      %v1265 = vld [vmem:[%s2 + $0x18] sm:$0xff]
      %v1266 = vld [vmem:[%s2 + $0x20] sm:$0xff]
      %v1267 = vld [vmem:[%s2 + $0x28] sm:$0xff]
      %v1268 = vld [vmem:[%s2 + $0x30] sm:$0xff]
      %v1269 = vld [vmem:[%s2 + $0x38] sm:$0xff]
      %v1278 = vunpack.c.l.b16 %v1262
      %v1279 = vunpack.c.h.b16 %v1262
      %v1280 = vunpack.c.l.b16 %v1263
      %v1281 = vunpack.c.h.b16 %v1263
      %v1282 = vunpack.c.l.b16 %v1264
      %v1283 = vunpack.c.h.b16 %v1264
      %v1284 = vunpack.c.l.b16 %v1265
      %v1285 = vunpack.c.h.b16 %v1265
      %v1286 = vunpack.c.l.b16 %v1266
      %v1287 = vunpack.c.h.b16 %v1266
      %v1288 = vunpack.c.l.b16 %v1267
      %v1289 = vunpack.c.h.b16 %v1267
      %v1290 = vunpack.c.l.b16 %v1268
      %v1291 = vunpack.c.h.b16 %v1268
      %v1292 = vunpack.c.l.b16 %v1269
      %v1293 = vunpack.c.h.b16 %v1269
      %v1294 = vpack.c.b16 %v1280, %v1278
      %v1295 = vpack.c.b16 %v1281, %v1279
      %v1296 = vpack.c.b16 %v1284, %v1282
      %v1297 = vpack.c.b16 %v1285, %v1283
      %v1298 = vpack.c.b16 %v1288, %v1286
      %v1299 = vpack.c.b16 %v1289, %v1287
      %v1300 = vpack.c.b16 %v1292, %v1290
      %v1301 = vpack.c.b16 %v1293, %v1291
      %v1309 = vsel %vm929, %v1237, 0
      %v1312 = vsel %vm929, %v1238, 0
      %v1315 = vsel %vm929, %v1239, 0
      %v1318 = vsel %vm929, %v1240, 0
      %v1321 = vsel %vm929, %v1241, 0
      %v1324 = vsel %vm929, %v1242, 0
      %v1327 = vsel %vm929, %v1243, 0
      %v1330 = vsel %vm929, %v1244, 0
      %v1333 = vsel %vm929, %v1245, 0
      %v1336 = vsel %vm929, %v1246, 0
      %v1339 = vsel %vm929, %v1247, 0
      %v1342 = vsel %vm929, %v1248, 0
      %v1345 = vsel %vm929, %v1249, 0
      %v1348 = vsel %vm929, %v1250, 0
      %v1351 = vsel %vm929, %v1251, 0
      %v1354 = vsel %vm929, %v1252, 0
      %v1357 = vsel %vm929, %v1253, 0
      %v1360 = vsel %vm929, %v1254, 0
      %v1363 = vsel %vm929, %v1255, 0
      %v1366 = vsel %vm929, %v1256, 0
      %v1369 = vsel %vm929, %v1257, 0
      %v1372 = vsel %vm929, %v1258, 0
      %v1375 = vsel %vm929, %v1259, 0
      %v1378 = vsel %vm929, %v1260, 0
      %v1381 = vsel %vm929, %v1261, 0
      %vm1383 = vcmask 1046528
      %vm1384 = vcmask 1047552
      %v1385 = vsel %vm1383, 4294967295, 65535
      %v1386 = vsel %vm1384, %v1385, 0
      %v1388 = vand.u32 %v1300, %v1386
      %v1391 = vand.u32 %v1301, %v1386
      %1393 = vmatprep.subr.bf16.mxu0 %v1295
      %1394 = vmatpush1.bf16.msra.mxu0 %v1294
      %1395 = vmatprep.subr.bf16.mxu0 %v1297
      %1396 = vmatpush1.bf16.msra.mxu0 %v1296
      %1397 = vmatprep.subr.bf16.mxu0 %v1299
      %1398 = vmatpush1.bf16.msra.mxu0 %v1298
      %1399 = vmatprep.subr.bf16.mxu0 %v1391
      %1400 = vmatpush1.bf16.msra.mxu0 %v1388
      %1401 = vmatprep.subr.bf16.mxu0 0
      %1402 = vmatpush1.bf16.msra.mxu0 0
      %1403 = vmatprep.subr.bf16.mxu0 0
      %1404 = vmatpush1.bf16.msra.mxu0 0
      %1405 = vmatprep.subr.bf16.mxu0 0
      %1406 = vmatpush1.bf16.msra.mxu0 0
      %1407 = vmatprep.subr.bf16.mxu0 0
      %1408 = vmatpush1.bf16.msra.mxu0 0
      %1409 = vmatprep.subr.bf16.mxu0 0
      %1410 = vmatpush1.bf16.msra.mxu0 0
      %1411 = vmatprep.subr.bf16.mxu0 0
      %1412 = vmatpush1.bf16.msra.mxu0 0
      %1413 = vmatprep.subr.bf16.mxu0 0
      %1414 = vmatpush1.bf16.msra.mxu0 0
      %1415 = vmatprep.subr.bf16.mxu0 0
      %1416 = vmatpush1.bf16.msra.mxu0 0
      %1417 = vmatprep.subr.bf16.mxu0 0
      %1418 = vmatpush1.bf16.msra.mxu0 0
      %1419 = vmatprep.subr.bf16.mxu0 0
      %1420 = vmatpush1.bf16.msra.mxu0 0
      %1421 = vmatprep.subr.bf16.mxu0 0
      %1422 = vmatpush1.bf16.msra.mxu0 0
      %1423 = vmatprep.subr.bf16.mxu0 0
      %1424 = vmatpush1.bf16.msra.mxu0 0
      %1425 = vmatprep.mubr.bf16.mxu0 0
      %1426 = vmatmul.mubr.bf16.gmra.mrb[0].mxu0 %v1309
      %v1427 = vpop.f32.mrb[0].mxu0
      %v1428 = vadd.f32 0.0, %v1427
      %v1429 = vpop.f32.mrb[0].mxu0
      %v1430 = vadd.f32 0.0, %v1429
      %v1431 = vpop.f32.mrb[0].mxu0
      %v1432 = vadd.f32 0.0, %v1431
      %v1433 = vpop.f32.mrb[0].mxu0
      %v1434 = vadd.f32 0.0, %v1433
      %1435 = vmatprep.mubr.bf16.mxu0 0
      %1436 = vmatmul.mubr.bf16.gmra.mrb[0].mxu0 %v1312
      %v1437 = vpop.f32.mrb[0].mxu0
      %v1438 = vadd.f32 0.0, %v1437
      %v1439 = vpop.f32.mrb[0].mxu0
      %v1440 = vadd.f32 0.0, %v1439
      %v1441 = vpop.f32.mrb[0].mxu0
      %v1442 = vadd.f32 0.0, %v1441
      %v1443 = vpop.f32.mrb[0].mxu0
      %v1444 = vadd.f32 0.0, %v1443
      %1445 = vmatprep.mubr.bf16.mxu0 0
      %1446 = vmatmul.mubr.bf16.gmra.mrb[0].mxu0 %v1315
      %v1447 = vpop.f32.mrb[0].mxu0
      %v1448 = vadd.f32 0.0, %v1447
      %v1449 = vpop.f32.mrb[0].mxu0
      %v1450 = vadd.f32 0.0, %v1449
      %v1451 = vpop.f32.mrb[0].mxu0
      %v1452 = vadd.f32 0.0, %v1451
      %v1453 = vpop.f32.mrb[0].mxu0
      %v1454 = vadd.f32 0.0, %v1453
      %1455 = vmatprep.mubr.bf16.mxu0 0
      %1456 = vmatmul.mubr.bf16.gmra.mrb[0].mxu0 %v1318
      %v1457 = vpop.f32.mrb[0].mxu0
      %v1458 = vadd.f32 0.0, %v1457
      %v1459 = vpop.f32.mrb[0].mxu0
      %v1460 = vadd.f32 0.0, %v1459
      %v1461 = vpop.f32.mrb[0].mxu0
      %v1462 = vadd.f32 0.0, %v1461
      %v1463 = vpop.f32.mrb[0].mxu0
      %v1464 = vadd.f32 0.0, %v1463
      %1465 = vmatprep.mubr.bf16.mxu0 0
      %1466 = vmatmul.mubr.bf16.gmra.mrb[0].mxu0 %v1321
      %v1467 = vpop.f32.mrb[0].mxu0
      %v1468 = vadd.f32 0.0, %v1467
      %v1469 = vpop.f32.mrb[0].mxu0
      %v1470 = vadd.f32 0.0, %v1469
      %v1471 = vpop.f32.mrb[0].mxu0
      %v1472 = vadd.f32 0.0, %v1471
      %v1473 = vpop.f32.mrb[0].mxu0
      %v1474 = vadd.f32 0.0, %v1473
      %1475 = vmatprep.mubr.bf16.mxu0 0
      %1476 = vmatmul.mubr.bf16.gmra.mrb[0].mxu0 %v1324
      %v1477 = vpop.f32.mrb[0].mxu0
      %v1478 = vadd.f32 0.0, %v1477
      %v1479 = vpop.f32.mrb[0].mxu0
      %v1480 = vadd.f32 0.0, %v1479
      %v1481 = vpop.f32.mrb[0].mxu0
      %v1482 = vadd.f32 0.0, %v1481
      %v1483 = vpop.f32.mrb[0].mxu0
      %v1484 = vadd.f32 0.0, %v1483
      %1485 = vmatprep.mubr.bf16.mxu0 0
      %1486 = vmatmul.mubr.bf16.gmra.mrb[0].mxu0 %v1327
      %v1487 = vpop.f32.mrb[0].mxu0
      %v1488 = vadd.f32 0.0, %v1487
      %v1489 = vpop.f32.mrb[0].mxu0
      %v1490 = vadd.f32 0.0, %v1489
      %v1491 = vpop.f32.mrb[0].mxu0
      %v1492 = vadd.f32 0.0, %v1491
      %v1493 = vpop.f32.mrb[0].mxu0
      %v1494 = vadd.f32 0.0, %v1493
      %1495 = vmatprep.mubr.bf16.mxu0 0
      %1496 = vmatmul.mubr.bf16.gmra.mrb[0].mxu0 %v1330
      %v1497 = vpop.f32.mrb[0].mxu0
      %v1498 = vadd.f32 0.0, %v1497
      %v1499 = vpop.f32.mrb[0].mxu0
      %v1500 = vadd.f32 0.0, %v1499
      %v1501 = vpop.f32.mrb[0].mxu0
      %v1502 = vadd.f32 0.0, %v1501
      %v1503 = vpop.f32.mrb[0].mxu0
      %v1504 = vadd.f32 0.0, %v1503
      %1505 = vmatprep.mubr.bf16.mxu0 0
      %1506 = vmatmul.mubr.bf16.gmra.mrb[0].mxu0 %v1333
      %v1507 = vpop.f32.mrb[0].mxu0
      %v1508 = vadd.f32 0.0, %v1507
      %v1509 = vpop.f32.mrb[0].mxu0
      %v1510 = vadd.f32 0.0, %v1509
      %v1511 = vpop.f32.mrb[0].mxu0
      %v1512 = vadd.f32 0.0, %v1511
      %v1513 = vpop.f32.mrb[0].mxu0
      %v1514 = vadd.f32 0.0, %v1513
      %1515 = vmatprep.mubr.bf16.mxu0 0
      %1516 = vmatmul.mubr.bf16.gmra.mrb[0].mxu0 %v1336
      %v1517 = vpop.f32.mrb[0].mxu0
      %v1518 = vadd.f32 0.0, %v1517
      %v1519 = vpop.f32.mrb[0].mxu0
      %v1520 = vadd.f32 0.0, %v1519
      %v1521 = vpop.f32.mrb[0].mxu0
      %v1522 = vadd.f32 0.0, %v1521
      %v1523 = vpop.f32.mrb[0].mxu0
      %v1524 = vadd.f32 0.0, %v1523
      %1525 = vmatprep.mubr.bf16.mxu0 0
      %1526 = vmatmul.mubr.bf16.gmra.mrb[0].mxu0 %v1339
      %v1527 = vpop.f32.mrb[0].mxu0
      %v1528 = vadd.f32 0.0, %v1527
      %v1529 = vpop.f32.mrb[0].mxu0
      %v1530 = vadd.f32 0.0, %v1529
      %v1531 = vpop.f32.mrb[0].mxu0
      %v1532 = vadd.f32 0.0, %v1531
      %v1533 = vpop.f32.mrb[0].mxu0
      %v1534 = vadd.f32 0.0, %v1533
      %1535 = vmatprep.mubr.bf16.mxu0 0
      %1536 = vmatmul.mubr.bf16.gmra.mrb[0].mxu0 %v1342
      %v1537 = vpop.f32.mrb[0].mxu0
      %v1538 = vadd.f32 0.0, %v1537
      %v1539 = vpop.f32.mrb[0].mxu0
      %v1540 = vadd.f32 0.0, %v1539
      %v1541 = vpop.f32.mrb[0].mxu0
      %v1542 = vadd.f32 0.0, %v1541
      %v1543 = vpop.f32.mrb[0].mxu0
      %v1544 = vadd.f32 0.0, %v1543
      %1545 = vmatprep.mubr.bf16.mxu0 0
      %1546 = vmatmul.mubr.bf16.gmra.mrb[0].mxu0 %v1345
      %v1547 = vpop.f32.mrb[0].mxu0
      %v1548 = vadd.f32 0.0, %v1547
      %v1549 = vpop.f32.mrb[0].mxu0
      %v1550 = vadd.f32 0.0, %v1549
      %v1551 = vpop.f32.mrb[0].mxu0
      %v1552 = vadd.f32 0.0, %v1551
      %v1553 = vpop.f32.mrb[0].mxu0
      %v1554 = vadd.f32 0.0, %v1553
      %1555 = vmatprep.mubr.bf16.mxu0 0
      %1556 = vmatmul.mubr.bf16.gmra.mrb[0].mxu0 %v1348
      %v1557 = vpop.f32.mrb[0].mxu0
      %v1558 = vadd.f32 0.0, %v1557
      %v1559 = vpop.f32.mrb[0].mxu0
      %v1560 = vadd.f32 0.0, %v1559
      %v1561 = vpop.f32.mrb[0].mxu0
      %v1562 = vadd.f32 0.0, %v1561
      %v1563 = vpop.f32.mrb[0].mxu0
      %v1564 = vadd.f32 0.0, %v1563
      %1565 = vmatprep.mubr.bf16.mxu0 0
      %1566 = vmatmul.mubr.bf16.gmra.mrb[0].mxu0 %v1351
      %v1567 = vpop.f32.mrb[0].mxu0
      %v1568 = vadd.f32 0.0, %v1567
      %v1569 = vpop.f32.mrb[0].mxu0
      %v1570 = vadd.f32 0.0, %v1569
      %v1571 = vpop.f32.mrb[0].mxu0
      %v1572 = vadd.f32 0.0, %v1571
      %v1573 = vpop.f32.mrb[0].mxu0
      %v1574 = vadd.f32 0.0, %v1573
      %1575 = vmatprep.mubr.bf16.mxu0 0
      %1576 = vmatmul.mubr.bf16.gmra.mrb[0].mxu0 %v1354
      %v1577 = vpop.f32.mrb[0].mxu0
      %v1578 = vadd.f32 0.0, %v1577
      %v1579 = vpop.f32.mrb[0].mxu0
      %v1580 = vadd.f32 0.0, %v1579
      %v1581 = vpop.f32.mrb[0].mxu0
      %v1582 = vadd.f32 0.0, %v1581
      %v1583 = vpop.f32.mrb[0].mxu0
      %v1584 = vadd.f32 0.0, %v1583
      %1585 = vmatprep.mubr.bf16.mxu0 0
      %1586 = vmatmul.mubr.bf16.gmra.mrb[0].mxu0 %v1357
      %v1587 = vpop.f32.mrb[0].mxu0
      %v1588 = vadd.f32 0.0, %v1587
      %v1589 = vpop.f32.mrb[0].mxu0
      %v1590 = vadd.f32 0.0, %v1589
      %v1591 = vpop.f32.mrb[0].mxu0
      %v1592 = vadd.f32 0.0, %v1591
      %v1593 = vpop.f32.mrb[0].mxu0
      %v1594 = vadd.f32 0.0, %v1593
      %1595 = vmatprep.mubr.bf16.mxu0 0
      %1596 = vmatmul.mubr.bf16.gmra.mrb[0].mxu0 %v1360
      %v1597 = vpop.f32.mrb[0].mxu0
      %v1598 = vadd.f32 0.0, %v1597
      %v1599 = vpop.f32.mrb[0].mxu0
      %v1600 = vadd.f32 0.0, %v1599
      %v1601 = vpop.f32.mrb[0].mxu0
      %v1602 = vadd.f32 0.0, %v1601
      %v1603 = vpop.f32.mrb[0].mxu0
      %v1604 = vadd.f32 0.0, %v1603
      %1605 = vmatprep.mubr.bf16.mxu0 0
      %1606 = vmatmul.mubr.bf16.gmra.mrb[0].mxu0 %v1363
      %v1607 = vpop.f32.mrb[0].mxu0
      %v1608 = vadd.f32 0.0, %v1607
      %v1609 = vpop.f32.mrb[0].mxu0
      %v1610 = vadd.f32 0.0, %v1609
      %v1611 = vpop.f32.mrb[0].mxu0
      %v1612 = vadd.f32 0.0, %v1611
      %v1613 = vpop.f32.mrb[0].mxu0
      %v1614 = vadd.f32 0.0, %v1613
      %1615 = vmatprep.mubr.bf16.mxu0 0
      %1616 = vmatmul.mubr.bf16.gmra.mrb[0].mxu0 %v1366
      %v1617 = vpop.f32.mrb[0].mxu0
      %v1618 = vadd.f32 0.0, %v1617
      %v1619 = vpop.f32.mrb[0].mxu0
      %v1620 = vadd.f32 0.0, %v1619
      %v1621 = vpop.f32.mrb[0].mxu0
      %v1622 = vadd.f32 0.0, %v1621
      %v1623 = vpop.f32.mrb[0].mxu0
      %v1624 = vadd.f32 0.0, %v1623
      %1625 = vmatprep.mubr.bf16.mxu0 0
      %1626 = vmatmul.mubr.bf16.gmra.mrb[0].mxu0 %v1369
      %v1627 = vpop.f32.mrb[0].mxu0
      %v1628 = vadd.f32 0.0, %v1627
      %v1629 = vpop.f32.mrb[0].mxu0
      %v1630 = vadd.f32 0.0, %v1629
      %v1631 = vpop.f32.mrb[0].mxu0
      %v1632 = vadd.f32 0.0, %v1631
      %v1633 = vpop.f32.mrb[0].mxu0
      %v1634 = vadd.f32 0.0, %v1633
      %1635 = vmatprep.mubr.bf16.mxu0 0
      %1636 = vmatmul.mubr.bf16.gmra.mrb[0].mxu0 %v1372
      %v1637 = vpop.f32.mrb[0].mxu0
      %v1638 = vadd.f32 0.0, %v1637
      %v1639 = vpop.f32.mrb[0].mxu0
      %v1640 = vadd.f32 0.0, %v1639
      %v1641 = vpop.f32.mrb[0].mxu0
      %v1642 = vadd.f32 0.0, %v1641
      %v1643 = vpop.f32.mrb[0].mxu0
      %v1644 = vadd.f32 0.0, %v1643
      %1645 = vmatprep.mubr.bf16.mxu0 0
      %1646 = vmatmul.mubr.bf16.gmra.mrb[0].mxu0 %v1375
      %v1647 = vpop.f32.mrb[0].mxu0
      %v1648 = vadd.f32 0.0, %v1647
      %v1649 = vpop.f32.mrb[0].mxu0
      %v1650 = vadd.f32 0.0, %v1649
      %v1651 = vpop.f32.mrb[0].mxu0
      %v1652 = vadd.f32 0.0, %v1651
      %v1653 = vpop.f32.mrb[0].mxu0
      %v1654 = vadd.f32 0.0, %v1653
      %1655 = vmatprep.mubr.bf16.mxu0 0
      %1656 = vmatmul.mubr.bf16.gmra.mrb[0].mxu0 %v1378
      %v1657 = vpop.f32.mrb[0].mxu0
      %v1658 = vadd.f32 0.0, %v1657
      %v1659 = vpop.f32.mrb[0].mxu0
      %v1660 = vadd.f32 0.0, %v1659
      %v1661 = vpop.f32.mrb[0].mxu0
      %v1662 = vadd.f32 0.0, %v1661
      %v1663 = vpop.f32.mrb[0].mxu0
      %v1664 = vadd.f32 0.0, %v1663
      %1665 = vmatprep.mubr.bf16.mxu0 0
      %1666 = vmatmul.mubr.bf16.gmra.mrb[0].mxu0 %v1381
      %v1667 = vpop.f32.mrb[0].mxu0
      %v1668 = vadd.f32 0.0, %v1667
      %v1669 = vpop.f32.mrb[0].mxu0
      %v1670 = vadd.f32 0.0, %v1669
      %v1671 = vpop.f32.mrb[0].mxu0
      %v1672 = vpop.f32.mrb[0].mxu0
      %1673 = vdwg.mxu0
      %1674 = vst [vmem:[%s152] sm:$0xff] %v1428
      %vm1675 = vcmask 523264
      %1676 = vst.msk [vmem:[%s152 + $0x8] sm:$0xff] %vm1675, %v1430
      %1677 = vst [vmem:[%s152 + $0x10] sm:$0xff] %v1432
      %1678 = vst.msk [vmem:[%s152 + $0x18] sm:$0xff] %vm1675, %v1434
      %1679 = vst [vmem:[%s152 + $0x20] sm:$0xff] %v1438
      %1680 = vst.msk [vmem:[%s152 + $0x28] sm:$0xff] %vm1675, %v1440
      %1681 = vst [vmem:[%s152 + $0x30] sm:$0xff] %v1442
      %1682 = vst.msk [vmem:[%s152 + $0x38] sm:$0xff] %vm1675, %v1444
      %1683 = vst [vmem:[%s152 + $0x40] sm:$0xff] %v1448
      %1684 = vst.msk [vmem:[%s152 + $0x48] sm:$0xff] %vm1675, %v1450
      %1685 = vst [vmem:[%s152 + $0x50] sm:$0xff] %v1452
      %1686 = vst.msk [vmem:[%s152 + $0x58] sm:$0xff] %vm1675, %v1454
      %1687 = vst [vmem:[%s152 + $0x60] sm:$0xff] %v1458
      %1688 = vst.msk [vmem:[%s152 + $0x68] sm:$0xff] %vm1675, %v1460
      %1689 = vst [vmem:[%s152 + $0x70] sm:$0xff] %v1462
      %1690 = vst.msk [vmem:[%s152 + $0x78] sm:$0xff] %vm1675, %v1464
      %1691 = vst [vmem:[%s152 + $0x80] sm:$0xff] %v1468
      %1692 = vst.msk [vmem:[%s152 + $0x88] sm:$0xff] %vm1675, %v1470
      %1693 = vst [vmem:[%s152 + $0x90] sm:$0xff] %v1472
      %1694 = vst.msk [vmem:[%s152 + $0x98] sm:$0xff] %vm1675, %v1474
      %1695 = vst [vmem:[%s152 + $0xa0] sm:$0xff] %v1478
      %1696 = vst.msk [vmem:[%s152 + $0xa8] sm:$0xff] %vm1675, %v1480
      %1697 = vst [vmem:[%s152 + $0xb0] sm:$0xff] %v1482
      %1698 = vst.msk [vmem:[%s152 + $0xb8] sm:$0xff] %vm1675, %v1484
      %1699 = vst [vmem:[%s152 + $0xc0] sm:$0xff] %v1488
      %1700 = vst.msk [vmem:[%s152 + $0xc8] sm:$0xff] %vm1675, %v1490
      %1701 = vst [vmem:[%s152 + $0xd0] sm:$0xff] %v1492
      %1702 = vst.msk [vmem:[%s152 + $0xd8] sm:$0xff] %vm1675, %v1494
      %1703 = vst [vmem:[%s152 + $0xe0] sm:$0xff] %v1498
      %1704 = vst.msk [vmem:[%s152 + $0xe8] sm:$0xff] %vm1675, %v1500
      %1705 = vst [vmem:[%s152 + $0xf0] sm:$0xff] %v1502
      %1706 = vst.msk [vmem:[%s152 + $0xf8] sm:$0xff] %vm1675, %v1504
      %1707 = vst [vmem:[%s152 + $0x100] sm:$0xff] %v1508
      %1708 = vst.msk [vmem:[%s152 + $0x108] sm:$0xff] %vm1675, %v1510
      %1709 = vst [vmem:[%s152 + $0x110] sm:$0xff] %v1512
      %1710 = vst.msk [vmem:[%s152 + $0x118] sm:$0xff] %vm1675, %v1514
      %1711 = vst [vmem:[%s152 + $0x120] sm:$0xff] %v1518
      %1712 = vst.msk [vmem:[%s152 + $0x128] sm:$0xff] %vm1675, %v1520
      %1713 = vst [vmem:[%s152 + $0x130] sm:$0xff] %v1522
      %1714 = vst.msk [vmem:[%s152 + $0x138] sm:$0xff] %vm1675, %v1524
      %1715 = vst [vmem:[%s152 + $0x140] sm:$0xff] %v1528
      %1716 = vst.msk [vmem:[%s152 + $0x148] sm:$0xff] %vm1675, %v1530
      %1717 = vst [vmem:[%s152 + $0x150] sm:$0xff] %v1532
      %1718 = vst.msk [vmem:[%s152 + $0x158] sm:$0xff] %vm1675, %v1534
      %1719 = vst [vmem:[%s152 + $0x160] sm:$0xff] %v1538
      %1720 = vst.msk [vmem:[%s152 + $0x168] sm:$0xff] %vm1675, %v1540
      %1721 = vst [vmem:[%s152 + $0x170] sm:$0xff] %v1542
      %1722 = vst.msk [vmem:[%s152 + $0x178] sm:$0xff] %vm1675, %v1544
      %1723 = vst [vmem:[%s152 + $0x180] sm:$0xff] %v1548
      %1724 = vst.msk [vmem:[%s152 + $0x188] sm:$0xff] %vm1675, %v1550
      %1725 = vst [vmem:[%s152 + $0x190] sm:$0xff] %v1552
      %1726 = vst.msk [vmem:[%s152 + $0x198] sm:$0xff] %vm1675, %v1554
      %1727 = vst [vmem:[%s152 + $0x1a0] sm:$0xff] %v1558
      %1728 = vst.msk [vmem:[%s152 + $0x1a8] sm:$0xff] %vm1675, %v1560
      %1729 = vst [vmem:[%s152 + $0x1b0] sm:$0xff] %v1562
      %1730 = vst.msk [vmem:[%s152 + $0x1b8] sm:$0xff] %vm1675, %v1564
      %1731 = vst [vmem:[%s152 + $0x1c0] sm:$0xff] %v1568
      %1732 = vst.msk [vmem:[%s152 + $0x1c8] sm:$0xff] %vm1675, %v1570
      %1733 = vst [vmem:[%s152 + $0x1d0] sm:$0xff] %v1572
      %1734 = vst.msk [vmem:[%s152 + $0x1d8] sm:$0xff] %vm1675, %v1574
      %1735 = vst [vmem:[%s152 + $0x1e0] sm:$0xff] %v1578
      %1736 = vst.msk [vmem:[%s152 + $0x1e8] sm:$0xff] %vm1675, %v1580
      %1737 = vst [vmem:[%s152 + $0x1f0] sm:$0xff] %v1582
      %1738 = vst.msk [vmem:[%s152 + $0x1f8] sm:$0xff] %vm1675, %v1584
      %1739 = vst [vmem:[%s152 + $0x200] sm:$0xff] %v1588
      %1740 = vst.msk [vmem:[%s152 + $0x208] sm:$0xff] %vm1675, %v1590
      %1741 = vst [vmem:[%s152 + $0x210] sm:$0xff] %v1592
      %1742 = vst.msk [vmem:[%s152 + $0x218] sm:$0xff] %vm1675, %v1594
      %1743 = vst [vmem:[%s152 + $0x220] sm:$0xff] %v1598
      %1744 = vst.msk [vmem:[%s152 + $0x228] sm:$0xff] %vm1675, %v1600
      %1745 = vst [vmem:[%s152 + $0x230] sm:$0xff] %v1602
      %1746 = vst.msk [vmem:[%s152 + $0x238] sm:$0xff] %vm1675, %v1604
      %1747 = vst [vmem:[%s152 + $0x240] sm:$0xff] %v1608
      %1748 = vst.msk [vmem:[%s152 + $0x248] sm:$0xff] %vm1675, %v1610
      %1749 = vst [vmem:[%s152 + $0x250] sm:$0xff] %v1612
      %1750 = vst.msk [vmem:[%s152 + $0x258] sm:$0xff] %vm1675, %v1614
      %1751 = vst [vmem:[%s152 + $0x260] sm:$0xff] %v1618
      %1752 = vst.msk [vmem:[%s152 + $0x268] sm:$0xff] %vm1675, %v1620
      %1753 = vst [vmem:[%s152 + $0x270] sm:$0xff] %v1622
      %1754 = vst.msk [vmem:[%s152 + $0x278] sm:$0xff] %vm1675, %v1624
      %1755 = vst [vmem:[%s152 + $0x280] sm:$0xff] %v1628
      %1756 = vst.msk [vmem:[%s152 + $0x288] sm:$0xff] %vm1675, %v1630
      %1757 = vst [vmem:[%s152 + $0x290] sm:$0xff] %v1632
      %1758 = vst.msk [vmem:[%s152 + $0x298] sm:$0xff] %vm1675, %v1634
      %1759 = vst [vmem:[%s152 + $0x2a0] sm:$0xff] %v1638
      %1760 = vst.msk [vmem:[%s152 + $0x2a8] sm:$0xff] %vm1675, %v1640
      %1761 = vst [vmem:[%s152 + $0x2b0] sm:$0xff] %v1642
      %1762 = vst.msk [vmem:[%s152 + $0x2b8] sm:$0xff] %vm1675, %v1644
      %1763 = vst [vmem:[%s152 + $0x2c0] sm:$0xff] %v1648
      %1764 = vst.msk [vmem:[%s152 + $0x2c8] sm:$0xff] %vm1675, %v1650
      %1765 = vst [vmem:[%s152 + $0x2d0] sm:$0xff] %v1652
      %1766 = vst.msk [vmem:[%s152 + $0x2d8] sm:$0xff] %vm1675, %v1654
      %1767 = vst [vmem:[%s152 + $0x2e0] sm:$0xff] %v1658
      %1768 = vst.msk [vmem:[%s152 + $0x2e8] sm:$0xff] %vm1675, %v1660
      %1769 = vst [vmem:[%s152 + $0x2f0] sm:$0xff] %v1662
      %1770 = vst.msk [vmem:[%s152 + $0x2f8] sm:$0xff] %vm1675, %v1664
      %1771 = vst [vmem:[%s152 + $0x300] sm:$0xff] %v1668
      %1772 = vst.msk [vmem:[%s152 + $0x308] sm:$0xff] %vm1675, %v1670
      %s1773 = smul.u32 49, %s14
      %p1774 = scmp.lt.s32.totalorder %s1773, 97
      %s1775 = scalar_select %p1774, %s1773, 97
      %s1776 = smul.addr %s1775, 2
      %s1777 = smul.addr %s1776, 8
      %s1778 = scalar_lea.vmem %s3, %s1777
      // Predicated region
      $region33: #{tpu_custom_call.1} parent=31 // pred_check
        %p1779 = pneg %p95
      $region34: #{tpu_custom_call.1} parent=31 // pred_check_branch
        %1781 = sbr.rel (%p1779) target = $region36
      $region35: #{tpu_custom_call.1} parent=31 // pred_region
        %s1782 = smul.u32 49, %s14
      $region36: #{tpu_custom_call.1} parent=31 // pred_fallthru
        _
    $region32: #{tpu_custom_call.1} parent=5 // pred_fallthru
      _
    %p1783 = scmp.le.s32.totalorder 2, %s9
    // Predicated region
    $region37: #{tpu_custom_call.1} parent=5 // pred_check
      %p1784 = pneg %p1783
    $region38: #{tpu_custom_call.1} parent=5 // pred_check_branch
      %1786 = sbr.rel (%p1784) target = $region40
    $region39: #{tpu_custom_call.1} parent=5 // pred_region
      %s1787 = ssub.s32 %s9, 2
      // Predicated region
      $region41: #{tpu_custom_call.1} parent=39 // pred_check
        %p1788 = pneg %p101
      $region42: #{tpu_custom_call.1} parent=39 // pred_check_branch
        %1790 = sbr.rel (%p1788) target = $region44
      $region43: #{tpu_custom_call.1} parent=39 // pred_region
        %s1791 = smul.u32 49, %s15
        %p1792 = scmp.lt.s32.totalorder %s1791, 97
        %s1793 = scalar_select %p1792, %s1791, 97
        %s1794 = smul.addr %s1793, 2
        %s1795 = smul.addr %s1794, 8
        %s1796 = scalar_lea.vmem %s3, %s1795
      $region44: #{tpu_custom_call.1} parent=39 // pred_fallthru
        _
    $region40: #{tpu_custom_call.1} parent=5 // pred_fallthru
      _
  $region6: #{tpu_custom_call.1} parent=0 // loop_footer
    %s13 = sadd.s32 1, %s9
  $region7: #{tpu_custom_call.1} parent=0 // loop_footer_branch
    %8 = sbr.rel target = $region3
  $region8: #{tpu_custom_call.1} parent=0 // loop_exit
    _

</llo_original>
